<compile_context>
chip_gen: v7x
topology: tpu7x:2x2x1
jax: 0.10.0
libtpu: 0.0.40
codegen_flags: <defaults>
</compile_context>

<pallas_src>
import jax
import jax.numpy as jnp
from jax.experimental import pallas as pl
from jax.experimental.pallas import tpu as pltpu


def _round_up(x, m):
    return ((x + m - 1) // m) * m


def _physical_vmem_bytes():
    try:
        return int(pltpu.get_tpu_info().vmem_capacity_bytes)
    except Exception:
        return 64 * 1024 * 1024     # v7x floor; v5e/v6e have 128 MiB


def gru_gating_kernel(x_ref, h_ref, w_rz_ref, w_in_ref, w_hn_ref,
                      b_rz_ref, b_in_ref, b_hn_ref, o_ref):
    x = x_ref[...]                      # (tm, dp), native dtype -> MXU directly
    h = h_ref[...]
    dp = x.shape[-1]

    # Fused r/z gates: one dot over concatenated K (dp multiple of 128 so the
    # concat and the result slices are lane-aligned and cheap).
    xh = jnp.concatenate([x, h], axis=-1)                      # (tm, 2*dp)
    rz = (jnp.dot(xh, w_rz_ref[...], preferred_element_type=jnp.float32)
          + b_rz_ref[...])
    # sigmoid(a) = 0.5 * (1 + tanh(a/2)): 1 EUP op/elem instead of exp+recip.
    rz = 0.5 * (1.0 + jnp.tanh(0.5 * rz))
    r = rz[:, :dp]
    z = rz[:, dp:]

    n = jnp.tanh(
        jnp.dot(x, w_in_ref[...], preferred_element_type=jnp.float32)
        + b_in_ref[...]
        + r * (jnp.dot(h, w_hn_ref[...], preferred_element_type=jnp.float32)
               + b_hn_ref[...]))

    h32 = h.astype(jnp.float32)
    # (1 - z) * n + z * h  ==  n + z * (h - n)
    o_ref[...] = (n + z * (h32 - n)).astype(o_ref.dtype)


def prepare_gru_params(w_ih, w_hh, b_ih, b_hh, *, param_dtype=None):
    """One-time prep of PyTorch GRUCell params for the kernel.

    w_ih, w_hh: (3D, D), gate order [r | z | n]; b_ih, b_hh: (3D,).
    Returns: fused/transposed/128-padded weights and f32 (1, *) biases.
    Pass bf16 arrays (or param_dtype=jnp.bfloat16) for the fast MXU path.
    """
    D = w_ih.shape[1]
    dp = _round_up(D, 128)
    if param_dtype is None:
        param_dtype = w_ih.dtype

    def split(a):
        return a[0:D], a[D:2 * D], a[2 * D:3 * D]

    w_ir, w_iz, w_in = split(w_ih)
    w_hr, w_hz, w_hn = split(w_hh)
    b_ir, b_iz, b_in = split(b_ih)
    b_hr, b_hz, b_hn = split(b_hh)

    def prep_w(w):      # (D, D) -> transposed + zero-padded (dp, dp)
        wt = jnp.transpose(w).astype(param_dtype)
        return jnp.pad(wt, ((0, dp - D), (0, dp - D)))

    def prep_b(b):      # (D,) -> (1, dp) f32
        return jnp.pad(b.astype(jnp.float32), (0, dp - D)).reshape(1, dp)

    # Fused r/z weight: rows = [x dims ; h dims], columns = [r | z].
    w_rz = jnp.concatenate(
        [jnp.concatenate([prep_w(w_ir), prep_w(w_iz)], axis=1),
         jnp.concatenate([prep_w(w_hr), prep_w(w_hz)], axis=1)],
        axis=0)                                                 # (2dp, 2dp)
    b_rz = jnp.concatenate([prep_b(b_ir + b_hr), prep_b(b_iz + b_hz)],
                           axis=1)                              # (1, 2dp)

    return dict(
        d=D, dp=dp,
        w_rz=w_rz, w_in=prep_w(w_in), w_hn=prep_w(w_hn),
        b_rz=b_rz, b_in=prep_b(b_in), b_hn=prep_b(b_hn),
    )


def _vmem_estimate(tm, dp, w_bytes, x_bytes, weight_bufs):
    weights = 6 * dp * dp * w_bytes * weight_bufs       # w_rz(2dp,2dp)+w_in+w_hn
    biases = 4 * dp * 4 * weight_bufs
    row_tiles = 3 * 2 * tm * dp * x_bytes                # double-buffered x/h/out
    temps = tm * dp * (2 * x_bytes + 10 * 4)             # xh concat + f32 gate temps
    return weights + biases + row_tiles + temps


def gru_gating(x, residual, params, *, tm=256):
    """x, residual: (B, N, D). params: output of prepare_gru_params."""
    B, N, D = x.shape
    assert params["d"] == D, "params were prepared for a different dim"
    dp = params["dp"]
    M = B * N
    w_dtype = params["w_rz"].dtype
    out_dtype = x.dtype

    # Keep the fast MXU path: operand dtype must match the prepared weights
    # (mixed f32/bf16 would silently promote and lose bf16 MXU throughput).
    if x.dtype != w_dtype:
        x = x.astype(w_dtype)
    if residual.dtype != w_dtype:
        residual = residual.astype(w_dtype)

    x_bytes = jnp.dtype(w_dtype).itemsize
    w_bytes = x_bytes
    sub = max(8, 32 // x_bytes)          # sublane tile: f32->8, bf16->16

    vmem_cap = _physical_vmem_bytes()
    budget = vmem_cap - (4 << 20)

    # Row tile: cap for tiny inputs, grow while VMEM headroom is ample
    # (v5e/v6e 128 MiB), shrink when VMEM-bound (v7x 64 MiB, large D).
    tm = max(sub, min(_round_up(tm, sub), _round_up(M, sub)))
    while (tm < 1024 and 2 * tm <= _round_up(M, sub)
           and 2 * _vmem_estimate(2 * tm, dp, w_bytes, x_bytes, 1) <= budget):
        tm *= 2
    while tm > sub and _vmem_estimate(tm, dp, w_bytes, x_bytes, 1) > budget:
        tm = max(sub, tm // 2)
    # TODO(synk): when the six resident (dp,dp)-equivalent weights alone exceed
    # the budget (dp >~ 2048 bf16 on v7x's 64 MiB VMEM), add a column grid axis
    # and stream weights as (dp, tn) tiles instead of keeping them resident.

    num_blocks = pl.cdiv(M, tm)          # no even-grid padding (waste on 1-TC chips)
    mp = num_blocks * tm

    x2 = x.reshape(M, D)
    h2 = residual.reshape(M, D)
    needs_pad = (mp != M) or (dp != D)
    if needs_pad:
        x2 = jnp.pad(x2, ((0, mp - M), (0, dp - D)))
        h2 = jnp.pad(h2, ((0, mp - M), (0, dp - D)))

    def call(single_buffer):
        # Resident (constant index_map) blocks: request a single buffer so the
        # compiler does not double-buffer weights that are never re-fetched.
        res = dict(pipeline_mode=pl.Buffered(1)) if single_buffer else {}
        row_spec = pl.BlockSpec((tm, dp), lambda i: (i, 0))
        w_rz_spec = pl.BlockSpec((2 * dp, 2 * dp), lambda i: (0, 0), **res)
        w_spec = pl.BlockSpec((dp, dp), lambda i: (0, 0), **res)
        b_rz_spec = pl.BlockSpec((1, 2 * dp), lambda i: (0, 0), **res)
        b_spec = pl.BlockSpec((1, dp), lambda i: (0, 0), **res)

        weight_bufs = 1 if single_buffer else 2
        est = _vmem_estimate(tm, dp, w_bytes, x_bytes, weight_bufs)
        vmem_limit = min(max(32 << 20, int(est * 1.3)), vmem_cap - (2 << 20))

        return pl.pallas_call(
            gru_gating_kernel,
            out_shape=jax.ShapeDtypeStruct((mp, dp), out_dtype),
            grid_spec=pltpu.PrefetchScalarGridSpec(
                num_scalar_prefetch=0,
                grid=(num_blocks,),
                in_specs=[row_spec, row_spec,
                          w_rz_spec, w_spec, w_spec,
                          b_rz_spec, b_spec, b_spec],
                out_specs=row_spec,
            ),
            compiler_params=pltpu.CompilerParams(
                dimension_semantics=("parallel",),
                vmem_limit_bytes=vmem_limit),
        )(x2, h2,
          params["w_rz"], params["w_in"], params["w_hn"],
          params["b_rz"], params["b_in"], params["b_hn"])

    try:
        out = call(single_buffer=True)
    except Exception:
        # Fallback if this jax build rejects Buffered(1) on resident blocks.
        out = call(single_buffer=False)

    if needs_pad:
        out = out[:M, :D]
    return out.reshape(B, N, D)


def gru_gating_ref(x, residual, w_ih, w_hh, b_ih, b_hh):
    """Pure-JAX reference (PyTorch GRUCell semantics) for correctness check."""
    B, N, D = x.shape
    xf = x.reshape(-1, D).astype(jnp.float32)
    hf = residual.reshape(-1, D).astype(jnp.float32)
    gi = xf @ w_ih.T.astype(jnp.float32) + b_ih.astype(jnp.float32)
    gh = hf @ w_hh.T.astype(jnp.float32) + b_hh.astype(jnp.float32)
    i_r, i_z, i_n = jnp.split(gi, 3, axis=-1)
    h_r, h_z, h_n = jnp.split(gh, 3, axis=-1)
    r = jax.nn.sigmoid(i_r + h_r)
    z = jax.nn.sigmoid(i_z + h_z)
    n = jnp.tanh(i_n + r * h_n)
    out = (1.0 - z) * n + z * hf
    return out.astype(x.dtype).reshape(B, N, D)


if __name__ == "__main__":
    B, N, D = 2, 8, 32

    key = jax.random.PRNGKey(0)
    kx, kr, k1, k2, k3, k4 = jax.random.split(key, 6)

    x = jax.random.normal(kx, (B, N, D), dtype=jnp.float32)
    residual = jax.random.normal(kr, (B, N, D), dtype=jnp.float32)

    # PyTorch GRUCell init: uniform(-1/sqrt(hidden), 1/sqrt(hidden))
    bound = 1.0 / (D ** 0.5)
    w_ih = jax.random.uniform(k1, (3 * D, D), jnp.float32, -bound, bound)
    w_hh = jax.random.uniform(k2, (3 * D, D), jnp.float32, -bound, bound)
    b_ih = jax.random.uniform(k3, (3 * D,), jnp.float32, -bound, bound)
    b_hh = jax.random.uniform(k4, (3 * D,), jnp.float32, -bound, bound)

    # One-time parameter prep (gate split / transpose / fuse / pad) outside the
    # per-forward call path.
    params = prepare_gru_params(w_ih, w_hh, b_ih, b_hh)

    out = gru_gating(x, residual, params)
    out = jax.block_until_ready(out)

    ref = gru_gating_ref(x, residual, w_ih, w_hh, b_ih, b_hh)
    assert out.shape == x.shape
    assert jnp.allclose(out, ref, atol=1e-5, rtol=1e-5), "mismatch vs reference"

    print("KERNEL_OK")
</pallas_src>

<mosaic_0001>
module attributes {stable_mosaic.version = 11 : i64} {
  func.func @gru_gating_kernel(%arg0: i32, %arg1: memref<16x128xf32, #tpu.memory_space<vmem>>, %arg2: memref<16x128xf32, #tpu.memory_space<vmem>>, %arg3: memref<256x256xf32, #tpu.memory_space<vmem>>, %arg4: memref<128x128xf32, #tpu.memory_space<vmem>>, %arg5: memref<128x128xf32, #tpu.memory_space<vmem>>, %arg6: memref<1x256xf32, #tpu.memory_space<vmem>>, %arg7: memref<1x128xf32, #tpu.memory_space<vmem>>, %arg8: memref<1x128xf32, #tpu.memory_space<vmem>>, %arg9: memref<16x128xf32, #tpu.memory_space<vmem>>) attributes {dimension_semantics = [#tpu.dimension_semantics<parallel>], iteration_bounds = array<i64: 1>, scalar_prefetch = 0 : i64, scratch_operands = 0 : i64, tpu.core_type = #tpu.core_type<tc>, window_params = [{transform_indices = @transform_0, window_bounds = array<i64: 16, 128>}, {transform_indices = @transform_1, window_bounds = array<i64: 16, 128>}, {pipeline_mode = #tpu.pipeline_mode<synchronous>, transform_indices = @transform_2, window_bounds = array<i64: 256, 256>}, {pipeline_mode = #tpu.pipeline_mode<synchronous>, transform_indices = @transform_3, window_bounds = array<i64: 128, 128>}, {pipeline_mode = #tpu.pipeline_mode<synchronous>, transform_indices = @transform_4, window_bounds = array<i64: 128, 128>}, {pipeline_mode = #tpu.pipeline_mode<synchronous>, transform_indices = @transform_5, window_bounds = array<i64: 1, 256>}, {pipeline_mode = #tpu.pipeline_mode<synchronous>, transform_indices = @transform_6, window_bounds = array<i64: 1, 128>}, {pipeline_mode = #tpu.pipeline_mode<synchronous>, transform_indices = @transform_7, window_bounds = array<i64: 1, 128>}, {transform_indices = @transform_8, window_bounds = array<i64: 16, 128>}]} {
    %c0 = arith.constant 0 : index
    %c0_0 = arith.constant 0 : index
    %0 = vector.load %arg1[%c0, %c0_0] : memref<16x128xf32, #tpu.memory_space<vmem>>, vector<16x128xf32>
    %c0_1 = arith.constant 0 : index
    %c0_2 = arith.constant 0 : index
    %1 = vector.load %arg2[%c0_1, %c0_2] : memref<16x128xf32, #tpu.memory_space<vmem>>, vector<16x128xf32>
    %2 = tpu.concatenate %0, %1 in 1 : vector<16x128xf32>, vector<16x128xf32> -> vector<16x256xf32>
    %c0_3 = arith.constant 0 : index
    %c0_4 = arith.constant 0 : index
    %3 = vector.load %arg3[%c0_3, %c0_4] : memref<256x256xf32, #tpu.memory_space<vmem>>, vector<256x256xf32>
    %cst = arith.constant dense<0.000000e+00> : vector<16x256xf32>
    %4 = tpu.matmul %2, %3, %cst {dimension_numbers = #tpu.dot_dimension_numbers<[1], [0], [0], [1], [0, 0, 1, 1], [], []>} : vector<16x256xf32>, vector<256x256xf32>, vector<16x256xf32> -> vector<16x256xf32>
    %c0_5 = arith.constant 0 : index
    %c0_6 = arith.constant 0 : index
    %5 = vector.load %arg6[%c0_5, %c0_6] : memref<1x256xf32, #tpu.memory_space<vmem>>, vector<1x256xf32>
    %6 = vector.broadcast %5 : vector<1x256xf32> to vector<16x256xf32>
    %7 = arith.addf %4, %6 : vector<16x256xf32>
    %cst_7 = arith.constant 5.000000e-01 : f32
    %8 = vector.broadcast %cst_7 : f32 to vector<16x256xf32>
    %9 = arith.mulf %8, %7 : vector<16x256xf32>
    %10 = math.tanh %9 : vector<16x256xf32>
    %cst_8 = arith.constant 1.000000e+00 : f32
    %11 = vector.broadcast %cst_8 : f32 to vector<16x256xf32>
    %12 = arith.addf %11, %10 : vector<16x256xf32>
    %cst_9 = arith.constant 5.000000e-01 : f32
    %13 = vector.broadcast %cst_9 : f32 to vector<16x256xf32>
    %14 = arith.mulf %13, %12 : vector<16x256xf32>
    %15 = vector.extract_strided_slice %14 {offsets = [0, 0], sizes = [16, 128], strides = [1, 1]} : vector<16x256xf32> to vector<16x128xf32>
    %16 = vector.extract_strided_slice %14 {offsets = [0, 128], sizes = [16, 128], strides = [1, 1]} : vector<16x256xf32> to vector<16x128xf32>
    %c0_10 = arith.constant 0 : index
    %c0_11 = arith.constant 0 : index
    %17 = vector.load %arg4[%c0_10, %c0_11] : memref<128x128xf32, #tpu.memory_space<vmem>>, vector<128x128xf32>
    %cst_12 = arith.constant dense<0.000000e+00> : vector<16x128xf32>
    %18 = tpu.matmul %0, %17, %cst_12 {dimension_numbers = #tpu.dot_dimension_numbers<[1], [0], [0], [1], [0, 0, 1, 1], [], []>} : vector<16x128xf32>, vector<128x128xf32>, vector<16x128xf32> -> vector<16x128xf32>
    %c0_13 = arith.constant 0 : index
    %c0_14 = arith.constant 0 : index
    %19 = vector.load %arg7[%c0_13, %c0_14] : memref<1x128xf32, #tpu.memory_space<vmem>>, vector<1x128xf32>
    %20 = vector.broadcast %19 : vector<1x128xf32> to vector<16x128xf32>
    %21 = arith.addf %18, %20 : vector<16x128xf32>
    %c0_15 = arith.constant 0 : index
    %c0_16 = arith.constant 0 : index
    %22 = vector.load %arg5[%c0_15, %c0_16] : memref<128x128xf32, #tpu.memory_space<vmem>>, vector<128x128xf32>
    %cst_17 = arith.constant dense<0.000000e+00> : vector<16x128xf32>
    %23 = tpu.matmul %1, %22, %cst_17 {dimension_numbers = #tpu.dot_dimension_numbers<[1], [0], [0], [1], [0, 0, 1, 1], [], []>} : vector<16x128xf32>, vector<128x128xf32>, vector<16x128xf32> -> vector<16x128xf32>
    %c0_18 = arith.constant 0 : index
    %c0_19 = arith.constant 0 : index
    %24 = vector.load %arg8[%c0_18, %c0_19] : memref<1x128xf32, #tpu.memory_space<vmem>>, vector<1x128xf32>
    %25 = vector.broadcast %24 : vector<1x128xf32> to vector<16x128xf32>
    %26 = arith.addf %23, %25 : vector<16x128xf32>
    %27 = arith.mulf %15, %26 : vector<16x128xf32>
    %28 = arith.addf %21, %27 : vector<16x128xf32>
    %29 = math.tanh %28 : vector<16x128xf32>
    %30 = arith.subf %1, %29 : vector<16x128xf32>
    %31 = arith.mulf %16, %30 : vector<16x128xf32>
    %32 = arith.addf %29, %31 : vector<16x128xf32>
    %c0_20 = arith.constant 0 : index
    %c0_21 = arith.constant 0 : index
    %33 = vector.load %arg9[%c0_20, %c0_21] : memref<16x128xf32, #tpu.memory_space<vmem>>, vector<16x128xf32>
    tpu.vector_store %arg9[%c0_20, %c0_21], %32 {strides = array<i32>} : memref<16x128xf32, #tpu.memory_space<vmem>>, vector<16x128xf32>,
    return
  }
  func.func @transform_0(%arg0: i32) -> (i32, i32) {
    %c0_i32 = arith.constant 0 : i32
    %c0_i32_0 = arith.constant 0 : i32
    return %arg0, %c0_i32 : i32, i32
  }
  func.func @transform_1(%arg0: i32) -> (i32, i32) {
    %c0_i32 = arith.constant 0 : i32
    %c0_i32_0 = arith.constant 0 : i32
    return %arg0, %c0_i32 : i32, i32
  }
  func.func @transform_2(%arg0: i32) -> (i32, i32) {
    %c0_i32 = arith.constant 0 : i32
    %c0_i32_0 = arith.constant 0 : i32
    %c0_i32_1 = arith.constant 0 : i32
    return %c0_i32, %c0_i32_0 : i32, i32
  }
  func.func @transform_3(%arg0: i32) -> (i32, i32) {
    %c0_i32 = arith.constant 0 : i32
    %c0_i32_0 = arith.constant 0 : i32
    %c0_i32_1 = arith.constant 0 : i32
    return %c0_i32, %c0_i32_0 : i32, i32
  }
  func.func @transform_4(%arg0: i32) -> (i32, i32) {
    %c0_i32 = arith.constant 0 : i32
    %c0_i32_0 = arith.constant 0 : i32
    %c0_i32_1 = arith.constant 0 : i32
    return %c0_i32, %c0_i32_0 : i32, i32
  }
  func.func @transform_5(%arg0: i32) -> (i32, i32) {
    %c0_i32 = arith.constant 0 : i32
    %c0_i32_0 = arith.constant 0 : i32
    %c0_i32_1 = arith.constant 0 : i32
    return %c0_i32, %c0_i32_0 : i32, i32
  }
  func.func @transform_6(%arg0: i32) -> (i32, i32) {
    %c0_i32 = arith.constant 0 : i32
    %c0_i32_0 = arith.constant 0 : i32
    %c0_i32_1 = arith.constant 0 : i32
    return %c0_i32, %c0_i32_0 : i32, i32
  }
  func.func @transform_7(%arg0: i32) -> (i32, i32) {
    %c0_i32 = arith.constant 0 : i32
    %c0_i32_0 = arith.constant 0 : i32
    %c0_i32_1 = arith.constant 0 : i32
    return %c0_i32, %c0_i32_0 : i32, i32
  }
  func.func @transform_8(%arg0: i32) -> (i32, i32) {
    %c0_i32 = arith.constant 0 : i32
    %c0_i32_0 = arith.constant 0 : i32
    return %arg0, %c0_i32 : i32, i32
  }
}

module attributes {stable_mosaic.version = 11 : i64} {
  func.func @gru_gating_kernel(%arg0: i32, %arg1: memref<16x128xf32, #tpu.memory_space<vmem>>, %arg2: memref<16x128xf32, #tpu.memory_space<vmem>>, %arg3: memref<256x256xf32, #tpu.memory_space<vmem>>, %arg4: memref<128x128xf32, #tpu.memory_space<vmem>>, %arg5: memref<128x128xf32, #tpu.memory_space<vmem>>, %arg6: memref<1x256xf32, #tpu.memory_space<vmem>>, %arg7: memref<1x128xf32, #tpu.memory_space<vmem>>, %arg8: memref<1x128xf32, #tpu.memory_space<vmem>>, %arg9: memref<16x128xf32, #tpu.memory_space<vmem>>) attributes {dimension_semantics = [#tpu.dimension_semantics<parallel>], iteration_bounds = array<i64: 1>, scalar_prefetch = 0 : i64, scratch_operands = 0 : i64, tpu.core_type = #tpu.core_type<tc>, window_params = [{transform_indices = @transform_0, window_bounds = array<i64: 16, 128>}, {transform_indices = @transform_1, window_bounds = array<i64: 16, 128>}, {pipeline_mode = #tpu.pipeline_mode<synchronous>, transform_indices = @transform_2, window_bounds = array<i64: 256, 256>}, {pipeline_mode = #tpu.pipeline_mode<synchronous>, transform_indices = @transform_3, window_bounds = array<i64: 128, 128>}, {pipeline_mode = #tpu.pipeline_mode<synchronous>, transform_indices = @transform_4, window_bounds = array<i64: 128, 128>}, {pipeline_mode = #tpu.pipeline_mode<synchronous>, transform_indices = @transform_5, window_bounds = array<i64: 1, 256>}, {pipeline_mode = #tpu.pipeline_mode<synchronous>, transform_indices = @transform_6, window_bounds = array<i64: 1, 128>}, {pipeline_mode = #tpu.pipeline_mode<synchronous>, transform_indices = @transform_7, window_bounds = array<i64: 1, 128>}, {transform_indices = @transform_8, window_bounds = array<i64: 16, 128>}]} {
    %c0 = arith.constant 0 : index
    %c0_0 = arith.constant 0 : index
    %0 = vector.load %arg1[%c0, %c0_0] : memref<16x128xf32, #tpu.memory_space<vmem>>, vector<16x128xf32>
    %c0_1 = arith.constant 0 : index
    %c0_2 = arith.constant 0 : index
    %1 = vector.load %arg2[%c0_1, %c0_2] : memref<16x128xf32, #tpu.memory_space<vmem>>, vector<16x128xf32>
    %2 = tpu.concatenate %0, %1 in 1 : vector<16x128xf32>, vector<16x128xf32> -> vector<16x256xf32>
    %c0_3 = arith.constant 0 : index
    %c0_4 = arith.constant 0 : index
    %3 = vector.load %arg3[%c0_3, %c0_4] : memref<256x256xf32, #tpu.memory_space<vmem>>, vector<256x256xf32>
    %cst = arith.constant dense<0.000000e+00> : vector<16x256xf32>
    %4 = tpu.matmul %2, %3, %cst {dimension_numbers = #tpu.dot_dimension_numbers<[1], [0], [0], [1], [0, 0, 1, 1], [], []>} : vector<16x256xf32>, vector<256x256xf32>, vector<16x256xf32> -> vector<16x256xf32>
    %c0_5 = arith.constant 0 : index
    %c0_6 = arith.constant 0 : index
    %5 = vector.load %arg6[%c0_5, %c0_6] : memref<1x256xf32, #tpu.memory_space<vmem>>, vector<1x256xf32>
    %6 = vector.broadcast %5 : vector<1x256xf32> to vector<16x256xf32>
    %7 = arith.addf %4, %6 : vector<16x256xf32>
    %cst_7 = arith.constant 5.000000e-01 : f32
    %8 = vector.broadcast %cst_7 : f32 to vector<16x256xf32>
    %9 = arith.mulf %8, %7 : vector<16x256xf32>
    %10 = math.tanh %9 : vector<16x256xf32>
    %cst_8 = arith.constant 1.000000e+00 : f32
    %11 = vector.broadcast %cst_8 : f32 to vector<16x256xf32>
    %12 = arith.addf %11, %10 : vector<16x256xf32>
    %cst_9 = arith.constant 5.000000e-01 : f32
    %13 = vector.broadcast %cst_9 : f32 to vector<16x256xf32>
    %14 = arith.mulf %13, %12 : vector<16x256xf32>
    %15 = vector.extract_strided_slice %14 {offsets = [0, 0], sizes = [16, 128], strides = [1, 1]} : vector<16x256xf32> to vector<16x128xf32>
    %16 = vector.extract_strided_slice %14 {offsets = [0, 128], sizes = [16, 128], strides = [1, 1]} : vector<16x256xf32> to vector<16x128xf32>
    %c0_10 = arith.constant 0 : index
    %c0_11 = arith.constant 0 : index
    %17 = vector.load %arg4[%c0_10, %c0_11] : memref<128x128xf32, #tpu.memory_space<vmem>>, vector<128x128xf32>
    %cst_12 = arith.constant dense<0.000000e+00> : vector<16x128xf32>
    %18 = tpu.matmul %0, %17, %cst_12 {dimension_numbers = #tpu.dot_dimension_numbers<[1], [0], [0], [1], [0, 0, 1, 1], [], []>} : vector<16x128xf32>, vector<128x128xf32>, vector<16x128xf32> -> vector<16x128xf32>
    %c0_13 = arith.constant 0 : index
    %c0_14 = arith.constant 0 : index
    %19 = vector.load %arg7[%c0_13, %c0_14] : memref<1x128xf32, #tpu.memory_space<vmem>>, vector<1x128xf32>
    %20 = vector.broadcast %19 : vector<1x128xf32> to vector<16x128xf32>
    %21 = arith.addf %18, %20 : vector<16x128xf32>
    %c0_15 = arith.constant 0 : index
    %c0_16 = arith.constant 0 : index
    %22 = vector.load %arg5[%c0_15, %c0_16] : memref<128x128xf32, #tpu.memory_space<vmem>>, vector<128x128xf32>
    %cst_17 = arith.constant dense<0.000000e+00> : vector<16x128xf32>
    %23 = tpu.matmul %1, %22, %cst_17 {dimension_numbers = #tpu.dot_dimension_numbers<[1], [0], [0], [1], [0, 0, 1, 1], [], []>} : vector<16x128xf32>, vector<128x128xf32>, vector<16x128xf32> -> vector<16x128xf32>
    %c0_18 = arith.constant 0 : index
    %c0_19 = arith.constant 0 : index
    %24 = vector.load %arg8[%c0_18, %c0_19] : memref<1x128xf32, #tpu.memory_space<vmem>>, vector<1x128xf32>
    %25 = vector.broadcast %24 : vector<1x128xf32> to vector<16x128xf32>
    %26 = arith.addf %23, %25 : vector<16x128xf32>
    %27 = arith.mulf %15, %26 : vector<16x128xf32>
    %28 = arith.addf %21, %27 : vector<16x128xf32>
    %29 = math.tanh %28 : vector<16x128xf32>
    %30 = arith.subf %1, %29 : vector<16x128xf32>
    %31 = arith.mulf %16, %30 : vector<16x128xf32>
    %32 = arith.addf %29, %31 : vector<16x128xf32>
    %c0_20 = arith.constant 0 : index
    %c0_21 = arith.constant 0 : index
    %33 = vector.load %arg9[%c0_20, %c0_21] : memref<16x128xf32, #tpu.memory_space<vmem>>, vector<16x128xf32>
    tpu.vector_store %arg9[%c0_20, %c0_21], %32 {strides = array<i32>} : memref<16x128xf32, #tpu.memory_space<vmem>>, vector<16x128xf32>,
    return
  }
  func.func @transform_0(%arg0: i32) -> (i32, i32) {
    %c0_i32 = arith.constant 0 : i32
    %c0_i32_0 = arith.constant 0 : i32
    return %arg0, %c0_i32 : i32, i32
  }
  func.func @transform_1(%arg0: i32) -> (i32, i32) {
    %c0_i32 = arith.constant 0 : i32
    %c0_i32_0 = arith.constant 0 : i32
    return %arg0, %c0_i32 : i32, i32
  }
  func.func @transform_2(%arg0: i32) -> (i32, i32) {
    %c0_i32 = arith.constant 0 : i32
    %c0_i32_0 = arith.constant 0 : i32
    %c0_i32_1 = arith.constant 0 : i32
    return %c0_i32, %c0_i32_0 : i32, i32
  }
  func.func @transform_3(%arg0: i32) -> (i32, i32) {
    %c0_i32 = arith.constant 0 : i32
    %c0_i32_0 = arith.constant 0 : i32
    %c0_i32_1 = arith.constant 0 : i32
    return %c0_i32, %c0_i32_0 : i32, i32
  }
  func.func @transform_4(%arg0: i32) -> (i32, i32) {
    %c0_i32 = arith.constant 0 : i32
    %c0_i32_0 = arith.constant 0 : i32
    %c0_i32_1 = arith.constant 0 : i32
    return %c0_i32, %c0_i32_0 : i32, i32
  }
  func.func @transform_5(%arg0: i32) -> (i32, i32) {
    %c0_i32 = arith.constant 0 : i32
    %c0_i32_0 = arith.constant 0 : i32
    %c0_i32_1 = arith.constant 0 : i32
    return %c0_i32, %c0_i32_0 : i32, i32
  }
  func.func @transform_6(%arg0: i32) -> (i32, i32) {
    %c0_i32 = arith.constant 0 : i32
    %c0_i32_0 = arith.constant 0 : i32
    %c0_i32_1 = arith.constant 0 : i32
    return %c0_i32, %c0_i32_0 : i32, i32
  }
  func.func @transform_7(%arg0: i32) -> (i32, i32) {
    %c0_i32 = arith.constant 0 : i32
    %c0_i32_0 = arith.constant 0 : i32
    %c0_i32_1 = arith.constant 0 : i32
    return %c0_i32, %c0_i32_0 : i32, i32
  }
  func.func @transform_8(%arg0: i32) -> (i32, i32) {
    %c0_i32 = arith.constant 0 : i32
    %c0_i32_0 = arith.constant 0 : i32
    return %arg0, %c0_i32 : i32, i32
  }
}

</mosaic_0001>

<llo_original>
// kernel: tpu_custom_call.1
$region0: #{tpu_custom_call.1}
  #allocation0 [shape = 'u32[]', space=smem, size = 0x4, offset = 0x4, fixed_abs, tag = 'smem constant byte address 0x4 - core index']
  #allocation1 [shape = 'u32[144,128]{1,0:T(1,128)}', space=vmem, size = 0x12000, scoped, tag = 'internal scratch']
  %s0 = inlined_call_operand.hbm [shape: f32[16,128], index: 0, kind: input, shape index: {}]
  %s1 = inlined_call_operand.hbm [shape: f32[16,128], index: 1, kind: input, shape index: {}]
  %s2 = inlined_call_operand.hbm [shape: f32[256,256], index: 2, kind: input, shape index: {}]
  %s3 = inlined_call_operand.hbm [shape: f32[128,128], index: 3, kind: input, shape index: {}]
  %s4 = inlined_call_operand.hbm [shape: f32[128,128], index: 4, kind: input, shape index: {}]
  %s5 = inlined_call_operand.vmem [shape: f32[1,256], index: 5, kind: input, shape index: {}]
  %s6 = inlined_call_operand.vmem [shape: f32[1,128], index: 6, kind: input, shape index: {}]
  %s7 = inlined_call_operand.vmem [shape: f32[1,128], index: 7, kind: input, shape index: {}]
  %s8 = inlined_call_operand.hbm [shape: f32[16,128], index: 8, kind: output, shape index: {}]
  %s9 = sld [smem:[#allocation0]]
  $region62: #{tpu_custom_call.1} parent=0
    _
  %s11 = ssub.s32 1, %s9
  %s12 = scalar_select 0, %s11, %s9
  $region1: #{tpu_custom_call.1} parent=0
    #allocation2 [shape = 'u8[8192]{0}', space=vmem, size = 0x2000, scoped, tag = 'input window, operand 0, single buffered']
    #allocation3 [shape = 's32[1]{0}', space=sflag, size = 0x4, scoped, tag = 'scoped memory for tpu_custom_call.1']
    #allocation4 [shape = 's32[1]{0}', space=sflag, size = 0x4, scoped, tag = 'scoped memory for tpu_custom_call.1']
    #allocation5 [shape = 'u8[8192]{0}', space=vmem, size = 0x2000, scoped, tag = 'input window, operand 1, single buffered']
    #allocation6 [shape = 's32[1]{0}', space=sflag, size = 0x4, scoped, tag = 'scoped memory for tpu_custom_call.1']
    #allocation7 [shape = 'u8[262144]{0}', space=vmem, size = 0x40000, scoped, tag = 'input window, operand 2, single buffered']
    #allocation8 [shape = 'u8[65536]{0}', space=vmem, size = 0x10000, scoped, tag = 'input window, operand 3, single buffered']
    #allocation9 [shape = 's32[1]{0}', space=sflag, size = 0x4, scoped, tag = 'scoped memory for tpu_custom_call.1']
    #allocation10 [shape = 'u8[65536]{0}', space=vmem, size = 0x10000, scoped, tag = 'input window, operand 4, single buffered']
    #allocation11 [shape = 'u8[8192]{0}', space=vmem, size = 0x2000, scoped, tag = 'output window, operand 0, single buffered']
    %13 = vsyncpa [#allocation3], 0
    %14 = vsyncpa [#allocation6], 0
    %15 = vsyncpa [#allocation9], 0
    %16 = vsyncpa [#allocation4], 0
    // Predicated region
    $region2: #{tpu_custom_call.1} parent=1 // pred_check
      _
    $region3: #{tpu_custom_call.1} parent=1 // pred_check_branch
      %18 = sbr.rel (0) target = $region5
    $region4: #{tpu_custom_call.1} parent=1 // pred_region
      %s20 = ssub.s32 256, 256
      %21 = vsyncadd [#allocation3], %s20
      %s22 = sshll.u32 [#allocation2], 4
      %s23 = int_to_ptr.vmem [resolvable:$true] %s22
      %28 = dma.hbm_to_vmem [thread:$0]  %s0, 256, %s23, [#allocation3], 128, 128, 8
    $region5: #{tpu_custom_call.1} parent=1 // pred_fallthru
      _
    // Predicated region
    $region6: #{tpu_custom_call.1} parent=1 // pred_check
      _
    $region7: #{tpu_custom_call.1} parent=1 // pred_check_branch
      %30 = sbr.rel (0) target = $region9
    $region8: #{tpu_custom_call.1} parent=1 // pred_region
      %s32 = ssub.s32 256, 256
      %33 = vsyncadd [#allocation6], %s32
      %s34 = sshll.u32 [#allocation5], 4
      %s35 = int_to_ptr.vmem [resolvable:$true] %s34
      %40 = dma.hbm_to_vmem [thread:$0]  %s1, 256, %s35, [#allocation6], 128, 128, 8
    $region9: #{tpu_custom_call.1} parent=1 // pred_fallthru
      _
    // Predicated region
    $region10: #{tpu_custom_call.1} parent=1 // pred_check
      _
    $region11: #{tpu_custom_call.1} parent=1 // pred_check_branch
      %42 = sbr.rel (0) target = $region13
    $region12: #{tpu_custom_call.1} parent=1 // pred_region
      %s44 = ssub.s32 8192, 8192
      %45 = vsyncadd [#allocation6], %s44
      %s46 = sshll.u32 [#allocation7], 4
      %s47 = int_to_ptr.vmem [resolvable:$true] %s46
      %52 = dma.hbm_to_vmem [thread:$0]  %s2, 8192, %s47, [#allocation6], 256, 256, 16
    $region13: #{tpu_custom_call.1} parent=1 // pred_fallthru
      _
    // Predicated region
    $region14: #{tpu_custom_call.1} parent=1 // pred_check
      _
    $region15: #{tpu_custom_call.1} parent=1 // pred_check_branch
      %54 = sbr.rel (0) target = $region17
    $region16: #{tpu_custom_call.1} parent=1 // pred_region
      %s56 = ssub.s32 2048, 2048
      %57 = vsyncadd [#allocation9], %s56
      %s58 = sshll.u32 [#allocation8], 4
      %s59 = int_to_ptr.vmem [resolvable:$true] %s58
      %64 = dma.hbm_to_vmem [thread:$0]  %s3, 2048, %s59, [#allocation9], 128, 128, 8
    $region17: #{tpu_custom_call.1} parent=1 // pred_fallthru
      _
    // Predicated region
    $region18: #{tpu_custom_call.1} parent=1 // pred_check
      _
    $region19: #{tpu_custom_call.1} parent=1 // pred_check_branch
      %66 = sbr.rel (0) target = $region21
    $region20: #{tpu_custom_call.1} parent=1 // pred_region
      %s68 = ssub.s32 2048, 2048
      %69 = vsyncadd [#allocation9], %s68
      %s70 = sshll.u32 [#allocation10], 4
      %s71 = int_to_ptr.vmem [resolvable:$true] %s70
      %76 = dma.hbm_to_vmem [thread:$0]  %s4, 2048, %s71, [#allocation9], 128, 128, 8
    $region21: #{tpu_custom_call.1} parent=1 // pred_fallthru
      _
    // Predicated region
    $region22: #{tpu_custom_call.1} parent=1 // pred_check
      _
    $region23: #{tpu_custom_call.1} parent=1 // pred_check_branch
      %78 = sbr.rel (0) target = $region25
    $region24: #{tpu_custom_call.1} parent=1 // pred_region
      _
    $region25: #{tpu_custom_call.1} parent=1 // pred_fallthru
      _
    // Predicated region
    $region26: #{tpu_custom_call.1} parent=1 // pred_check
      _
    $region27: #{tpu_custom_call.1} parent=1 // pred_check_branch
      %80 = sbr.rel (0) target = $region29
    $region28: #{tpu_custom_call.1} parent=1 // pred_region
      _
    $region29: #{tpu_custom_call.1} parent=1 // pred_fallthru
      _
    // Predicated region
    $region30: #{tpu_custom_call.1} parent=1 // pred_check
      _
    $region31: #{tpu_custom_call.1} parent=1 // pred_check_branch
      %82 = sbr.rel (0) target = $region33
    $region32: #{tpu_custom_call.1} parent=1 // pred_region
      _
    $region33: #{tpu_custom_call.1} parent=1 // pred_fallthru
      _
    // Predicated region
    $region34: #{tpu_custom_call.1} parent=1 // pred_check
      _
    $region35: #{tpu_custom_call.1} parent=1 // pred_check_branch
      %84 = sbr.rel (0) target = $region37
    $region36: #{tpu_custom_call.1} parent=1 // pred_region
      %85 = dma.done [#allocation3], 256
    $region37: #{tpu_custom_call.1} parent=1 // pred_fallthru
      _
    // Predicated region
    $region38: #{tpu_custom_call.1} parent=1 // pred_check
      _
    $region39: #{tpu_custom_call.1} parent=1 // pred_check_branch
      %87 = sbr.rel (0) target = $region41
    $region40: #{tpu_custom_call.1} parent=1 // pred_region
      %88 = dma.done [#allocation6], 256
    $region41: #{tpu_custom_call.1} parent=1 // pred_fallthru
      _
    // Predicated region
    $region42: #{tpu_custom_call.1} parent=1 // pred_check
      _
    $region43: #{tpu_custom_call.1} parent=1 // pred_check_branch
      %90 = sbr.rel (0) target = $region45
    $region44: #{tpu_custom_call.1} parent=1 // pred_region
      %91 = dma.done [#allocation6], 8192
    $region45: #{tpu_custom_call.1} parent=1 // pred_fallthru
      _
    // Predicated region
    $region46: #{tpu_custom_call.1} parent=1 // pred_check
      _
    $region47: #{tpu_custom_call.1} parent=1 // pred_check_branch
      %93 = sbr.rel (0) target = $region49
    $region48: #{tpu_custom_call.1} parent=1 // pred_region
      %94 = dma.done [#allocation9], 2048
    $region49: #{tpu_custom_call.1} parent=1 // pred_fallthru
      _
    // Predicated region
    $region50: #{tpu_custom_call.1} parent=1 // pred_check
      _
    $region51: #{tpu_custom_call.1} parent=1 // pred_check_branch
      %96 = sbr.rel (0) target = $region53
    $region52: #{tpu_custom_call.1} parent=1 // pred_region
      %97 = dma.done [#allocation9], 2048
    $region53: #{tpu_custom_call.1} parent=1 // pred_fallthru
      _
    %v98 = vld [vmem:[#allocation2] sm:$0xff]
    %v99 = vld [vmem:[#allocation2 + $0x8] sm:$0xff]
    %v100 = vld [vmem:[#allocation5] sm:$0xff]
    %v101 = vld [vmem:[#allocation5 + $0x8] sm:$0xff]
    %v102 = vld [vmem:[#allocation7] sm:$0xff]
    %v103 = vld [vmem:[#allocation7 + $0x8] sm:$0xff]
    %v104 = vld [vmem:[#allocation7 + $0x10] sm:$0xff]
    %v105 = vld [vmem:[#allocation7 + $0x18] sm:$0xff]
    %v106 = vld [vmem:[#allocation7 + $0x20] sm:$0xff]
    %v107 = vld [vmem:[#allocation7 + $0x28] sm:$0xff]
    %v108 = vld [vmem:[#allocation7 + $0x30] sm:$0xff]
    %v109 = vld [vmem:[#allocation7 + $0x38] sm:$0xff]
    %v110 = vld [vmem:[#allocation7 + $0x40] sm:$0xff]
    %v111 = vld [vmem:[#allocation7 + $0x48] sm:$0xff]
    %v112 = vld [vmem:[#allocation7 + $0x50] sm:$0xff]
    %v113 = vld [vmem:[#allocation7 + $0x58] sm:$0xff]
    %v114 = vld [vmem:[#allocation7 + $0x60] sm:$0xff]
    %v115 = vld [vmem:[#allocation7 + $0x68] sm:$0xff]
    %v116 = vld [vmem:[#allocation7 + $0x70] sm:$0xff]
    %v117 = vld [vmem:[#allocation7 + $0x78] sm:$0xff]
    %v118 = vld [vmem:[#allocation7 + $0x80] sm:$0xff]
    %v119 = vld [vmem:[#allocation7 + $0x88] sm:$0xff]
    %v120 = vld [vmem:[#allocation7 + $0x90] sm:$0xff]
    %v121 = vld [vmem:[#allocation7 + $0x98] sm:$0xff]
    %v122 = vld [vmem:[#allocation7 + $0xa0] sm:$0xff]
    %v123 = vld [vmem:[#allocation7 + $0xa8] sm:$0xff]
    %v124 = vld [vmem:[#allocation7 + $0xb0] sm:$0xff]
    %v125 = vld [vmem:[#allocation7 + $0xb8] sm:$0xff]
    %v126 = vld [vmem:[#allocation7 + $0xc0] sm:$0xff]
    %v127 = vld [vmem:[#allocation7 + $0xc8] sm:$0xff]
    %v128 = vld [vmem:[#allocation7 + $0xd0] sm:$0xff]
    %v129 = vld [vmem:[#allocation7 + $0xd8] sm:$0xff]
    %v130 = vld [vmem:[#allocation7 + $0xe0] sm:$0xff]
    %v131 = vld [vmem:[#allocation7 + $0xe8] sm:$0xff]
    %v132 = vld [vmem:[#allocation7 + $0xf0] sm:$0xff]
    %v133 = vld [vmem:[#allocation7 + $0xf8] sm:$0xff]
    %v134 = vld [vmem:[#allocation7 + $0x100] sm:$0xff]
    %v135 = vld [vmem:[#allocation7 + $0x108] sm:$0xff]
    %v136 = vld [vmem:[#allocation7 + $0x110] sm:$0xff]
    %v137 = vld [vmem:[#allocation7 + $0x118] sm:$0xff]
    %v138 = vld [vmem:[#allocation7 + $0x120] sm:$0xff]
    %v139 = vld [vmem:[#allocation7 + $0x128] sm:$0xff]
    %v140 = vld [vmem:[#allocation7 + $0x130] sm:$0xff]
    %v141 = vld [vmem:[#allocation7 + $0x138] sm:$0xff]
    %v142 = vld [vmem:[#allocation7 + $0x140] sm:$0xff]
    %v143 = vld [vmem:[#allocation7 + $0x148] sm:$0xff]
    %v144 = vld [vmem:[#allocation7 + $0x150] sm:$0xff]
    %v145 = vld [vmem:[#allocation7 + $0x158] sm:$0xff]
    %v146 = vld [vmem:[#allocation7 + $0x160] sm:$0xff]
    %v147 = vld [vmem:[#allocation7 + $0x168] sm:$0xff]
    %v148 = vld [vmem:[#allocation7 + $0x170] sm:$0xff]
    %v149 = vld [vmem:[#allocation7 + $0x178] sm:$0xff]
    %v150 = vld [vmem:[#allocation7 + $0x180] sm:$0xff]
    %v151 = vld [vmem:[#allocation7 + $0x188] sm:$0xff]
    %v152 = vld [vmem:[#allocation7 + $0x190] sm:$0xff]
    %v153 = vld [vmem:[#allocation7 + $0x198] sm:$0xff]
    %v154 = vld [vmem:[#allocation7 + $0x1a0] sm:$0xff]
    %v155 = vld [vmem:[#allocation7 + $0x1a8] sm:$0xff]
    %v156 = vld [vmem:[#allocation7 + $0x1b0] sm:$0xff]
    %v157 = vld [vmem:[#allocation7 + $0x1b8] sm:$0xff]
    %v158 = vld [vmem:[#allocation7 + $0x1c0] sm:$0xff]
    %v159 = vld [vmem:[#allocation7 + $0x1c8] sm:$0xff]
    %v160 = vld [vmem:[#allocation7 + $0x1d0] sm:$0xff]
    %v161 = vld [vmem:[#allocation7 + $0x1d8] sm:$0xff]
    %v162 = vld [vmem:[#allocation7 + $0x1e0] sm:$0xff]
    %v163 = vld [vmem:[#allocation7 + $0x1e8] sm:$0xff]
    %v164 = vld [vmem:[#allocation7 + $0x1f0] sm:$0xff]
    %v165 = vld [vmem:[#allocation7 + $0x1f8] sm:$0xff]
    %v166 = vld [vmem:[%s5] sm:$0x3]
    %v168 = vlaneseq
    %v169 = vshrl.u32 %v168, 7
    %v170 = vsub.s32 0, %v169
    %v171 = vrot.slane %v166, %v170
    %v172 = vlaneseq
    %v173 = vshrl.u32 %v172, 7
    %v174 = vsub.s32 1, %v173
    %v175 = vrot.slane %v166, %v174
    %178 = vmatprep.subr.mxu0 %v103
    %179 = vmatpush1.msra.mxu0 %v102
    %180 = vmatprep.subr.mxu0 %v105
    %181 = vmatpush1.msra.mxu0 %v104
    %182 = vmatprep.subr.mxu0 %v107
    %183 = vmatpush1.msra.mxu0 %v106
    %184 = vmatprep.subr.mxu0 %v109
    %185 = vmatpush1.msra.mxu0 %v108
    %186 = vmatprep.subr.mxu0 %v111
    %187 = vmatpush1.msra.mxu0 %v110
    %188 = vmatprep.subr.mxu0 %v113
    %189 = vmatpush1.msra.mxu0 %v112
    %190 = vmatprep.subr.mxu0 %v115
    %191 = vmatpush1.msra.mxu0 %v114
    %192 = vmatprep.subr.mxu0 %v117
    %193 = vmatpush1.msra.mxu0 %v116
    %194 = vmatprep.subr.mxu0 %v119
    %195 = vmatpush1.msra.mxu0 %v118
    %196 = vmatprep.subr.mxu0 %v121
    %197 = vmatpush1.msra.mxu0 %v120
    %198 = vmatprep.subr.mxu0 %v123
    %199 = vmatpush1.msra.mxu0 %v122
    %200 = vmatprep.subr.mxu0 %v125
    %201 = vmatpush1.msra.mxu0 %v124
    %202 = vmatprep.subr.mxu0 %v127
    %203 = vmatpush1.msra.mxu0 %v126
    %204 = vmatprep.subr.mxu0 %v129
    %205 = vmatpush1.msra.mxu0 %v128
    %206 = vmatprep.subr.mxu0 %v131
    %207 = vmatpush1.msra.mxu0 %v130
    %208 = vmatprep.subr.mxu0 %v133
    %209 = vmatpush1.msra.mxu0 %v132
    %210 = vmatprep.subr.mxu0 %v135
    %211 = vmatpush1.msra.mxu0 %v134
    %212 = vmatprep.subr.mxu0 %v137
    %213 = vmatpush1.msra.mxu0 %v136
    %214 = vmatprep.subr.mxu0 %v139
    %215 = vmatpush1.msra.mxu0 %v138
    %216 = vmatprep.subr.mxu0 %v141
    %217 = vmatpush1.msra.mxu0 %v140
    %218 = vmatprep.subr.mxu0 %v143
    %219 = vmatpush1.msra.mxu0 %v142
    %220 = vmatprep.subr.mxu0 %v145
    %221 = vmatpush1.msra.mxu0 %v144
    %222 = vmatprep.subr.mxu0 %v147
    %223 = vmatpush1.msra.mxu0 %v146
    %224 = vmatprep.subr.mxu0 %v149
    %225 = vmatpush1.msra.mxu0 %v148
    %226 = vmatprep.subr.mxu0 %v151
    %227 = vmatpush1.msra.mxu0 %v150
    %228 = vmatprep.subr.mxu0 %v153
    %229 = vmatpush1.msra.mxu0 %v152
    %230 = vmatprep.subr.mxu0 %v155
    %231 = vmatpush1.msra.mxu0 %v154
    %232 = vmatprep.subr.mxu0 %v157
    %233 = vmatpush1.msra.mxu0 %v156
    %234 = vmatprep.subr.mxu0 %v159
    %235 = vmatpush1.msra.mxu0 %v158
    %236 = vmatprep.subr.mxu0 %v161
    %237 = vmatpush1.msra.mxu0 %v160
    %238 = vmatprep.subr.mxu0 %v163
    %239 = vmatpush1.msra.mxu0 %v162
    %240 = vmatprep.subr.mxu0 %v165
    %241 = vmatpush1.msra.mxu0 %v164
    %242 = vmatprep.mubr.f32.mxu0 %v100
    %243 = vmatmul.mubr.f32.gmra.mrb[0].mxu0 %v98
    %v244 = vpop.f32.mrb[0].mxu0
    %v245 = vadd.f32 %v171, %v244
    %v246 = vpop.f32.mrb[0].mxu0
    %v247 = vadd.f32 %v175, %v246
    %248 = vmatprep.mubr.f32.mxu0 %v101
    %249 = vmatmul.mubr.f32.gmra.mrb[0].mxu0 %v99
    %v250 = vpop.f32.mrb[0].mxu0
    %v251 = vadd.f32 %v171, %v250
    %v252 = vpop.f32.mrb[0].mxu0
    %v253 = vadd.f32 %v175, %v252
    %254 = vdwg.mxu0
    %v255 = vmul.f32 %v245, 0.5
    %v256 = vmul.f32 %v247, 0.5
    %v257 = vmul.f32 %v251, 0.5
    %v258 = vmul.f32 %v253, 0.5
    %v259 = vtanh.pop %v255
    %v260 = vtanh.pop %v256
    %v261 = vtanh.pop %v257
    %v262 = vtanh.pop %v258
    %v263 = vadd.f32 %v259, 1.0
    %v264 = vadd.f32 %v260, 1.0
    %v265 = vadd.f32 %v261, 1.0
    %v266 = vadd.f32 %v262, 1.0
    %v267 = vmul.f32 %v263, 0.5
    %v268 = vmul.f32 %v264, 0.5
    %v269 = vmul.f32 %v265, 0.5
    %v270 = vmul.f32 %v266, 0.5
    %v271 = vld [vmem:[#allocation8] sm:$0xff]
    %v272 = vld [vmem:[#allocation8 + $0x8] sm:$0xff]
    %v273 = vld [vmem:[#allocation8 + $0x10] sm:$0xff]
    %v274 = vld [vmem:[#allocation8 + $0x18] sm:$0xff]
    %v275 = vld [vmem:[#allocation8 + $0x20] sm:$0xff]
    %v276 = vld [vmem:[#allocation8 + $0x28] sm:$0xff]
    %v277 = vld [vmem:[#allocation8 + $0x30] sm:$0xff]
    %v278 = vld [vmem:[#allocation8 + $0x38] sm:$0xff]
    %v279 = vld [vmem:[#allocation8 + $0x40] sm:$0xff]
    %v280 = vld [vmem:[#allocation8 + $0x48] sm:$0xff]
    %v281 = vld [vmem:[#allocation8 + $0x50] sm:$0xff]
    %v282 = vld [vmem:[#allocation8 + $0x58] sm:$0xff]
    %v283 = vld [vmem:[#allocation8 + $0x60] sm:$0xff]
    %v284 = vld [vmem:[#allocation8 + $0x68] sm:$0xff]
    %v285 = vld [vmem:[#allocation8 + $0x70] sm:$0xff]
    %v286 = vld [vmem:[#allocation8 + $0x78] sm:$0xff]
    %v287 = vld [vmem:[%s6] sm:$0x1]
    %v289 = vlaneseq
    %v290 = vshrl.u32 %v289, 7
    %v291 = vsub.s32 0, %v290
    %v292 = vrot.slane %v287, %v291
    %294 = vmatprep.subr.mxu0 0.0
    %295 = vmatpush1.msra.mxu0 %v271
    %296 = vmatprep.subr.mxu0 0.0
    %297 = vmatpush1.msra.mxu0 %v272
    %298 = vmatprep.subr.mxu0 0.0
    %299 = vmatpush1.msra.mxu0 %v273
    %300 = vmatprep.subr.mxu0 0.0
    %301 = vmatpush1.msra.mxu0 %v274
    %302 = vmatprep.subr.mxu0 0.0
    %303 = vmatpush1.msra.mxu0 %v275
    %304 = vmatprep.subr.mxu0 0.0
    %305 = vmatpush1.msra.mxu0 %v276
    %306 = vmatprep.subr.mxu0 0.0
    %307 = vmatpush1.msra.mxu0 %v277
    %308 = vmatprep.subr.mxu0 0.0
    %309 = vmatpush1.msra.mxu0 %v278
    %310 = vmatprep.subr.mxu0 0.0
    %311 = vmatpush1.msra.mxu0 %v279
    %312 = vmatprep.subr.mxu0 0.0
    %313 = vmatpush1.msra.mxu0 %v280
    %314 = vmatprep.subr.mxu0 0.0
    %315 = vmatpush1.msra.mxu0 %v281
    %316 = vmatprep.subr.mxu0 0.0
    %317 = vmatpush1.msra.mxu0 %v282
    %318 = vmatprep.subr.mxu0 0.0
    %319 = vmatpush1.msra.mxu0 %v283
    %320 = vmatprep.subr.mxu0 0.0
    %321 = vmatpush1.msra.mxu0 %v284
    %322 = vmatprep.subr.mxu0 0.0
    %323 = vmatpush1.msra.mxu0 %v285
    %324 = vmatprep.subr.mxu0 0.0
    %325 = vmatpush1.msra.mxu0 %v286
    %326 = vmatprep.subr.mxu0 0.0
    %327 = vmatpush1.msra.mxu0 0.0
    %328 = vmatprep.subr.mxu0 0.0
    %329 = vmatpush1.msra.mxu0 0.0
    %330 = vmatprep.subr.mxu0 0.0
    %331 = vmatpush1.msra.mxu0 0.0
    %332 = vmatprep.subr.mxu0 0.0
    %333 = vmatpush1.msra.mxu0 0.0
    %334 = vmatprep.subr.mxu0 0.0
    %335 = vmatpush1.msra.mxu0 0.0
    %336 = vmatprep.subr.mxu0 0.0
    %337 = vmatpush1.msra.mxu0 0.0
    %338 = vmatprep.subr.mxu0 0.0
    %339 = vmatpush1.msra.mxu0 0.0
    %340 = vmatprep.subr.mxu0 0.0
    %341 = vmatpush1.msra.mxu0 0.0
    %342 = vmatprep.subr.mxu0 0.0
    %343 = vmatpush1.msra.mxu0 0.0
    %344 = vmatprep.subr.mxu0 0.0
    %345 = vmatpush1.msra.mxu0 0.0
    %346 = vmatprep.subr.mxu0 0.0
    %347 = vmatpush1.msra.mxu0 0.0
    %348 = vmatprep.subr.mxu0 0.0
    %349 = vmatpush1.msra.mxu0 0.0
    %350 = vmatprep.subr.mxu0 0.0
    %351 = vmatpush1.msra.mxu0 0.0
    %352 = vmatprep.subr.mxu0 0.0
    %353 = vmatpush1.msra.mxu0 0.0
    %354 = vmatprep.subr.mxu0 0.0
    %355 = vmatpush1.msra.mxu0 0.0
    %356 = vmatprep.subr.mxu0 0.0
    %357 = vmatpush1.msra.mxu0 0.0
    %358 = vmatprep.mubr.f32.mxu0 0.0
    %359 = vmatmul.mubr.f32.gmra.mrb[0].mxu0 %v98
    %v360 = vpop.f32.mrb[0].mxu0
    %v361 = vadd.f32 %v292, %v360
    %v362 = vpop.f32.mrb[0].mxu0
    %363 = vmatprep.mubr.f32.mxu0 0.0
    %364 = vmatmul.mubr.f32.gmra.mrb[0].mxu0 %v99
    %v365 = vpop.f32.mrb[0].mxu0
    %v366 = vadd.f32 %v292, %v365
    %v367 = vpop.f32.mrb[0].mxu0
    %368 = vdwg.mxu0
    %v369 = vld [vmem:[#allocation10] sm:$0xff]
    %v370 = vld [vmem:[#allocation10 + $0x8] sm:$0xff]
    %v371 = vld [vmem:[#allocation10 + $0x10] sm:$0xff]
    %v372 = vld [vmem:[#allocation10 + $0x18] sm:$0xff]
    %v373 = vld [vmem:[#allocation10 + $0x20] sm:$0xff]
    %v374 = vld [vmem:[#allocation10 + $0x28] sm:$0xff]
    %v375 = vld [vmem:[#allocation10 + $0x30] sm:$0xff]
    %v376 = vld [vmem:[#allocation10 + $0x38] sm:$0xff]
    %v377 = vld [vmem:[#allocation10 + $0x40] sm:$0xff]
    %v378 = vld [vmem:[#allocation10 + $0x48] sm:$0xff]
    %v379 = vld [vmem:[#allocation10 + $0x50] sm:$0xff]
    %v380 = vld [vmem:[#allocation10 + $0x58] sm:$0xff]
    %v381 = vld [vmem:[#allocation10 + $0x60] sm:$0xff]
    %v382 = vld [vmem:[#allocation10 + $0x68] sm:$0xff]
    %v383 = vld [vmem:[#allocation10 + $0x70] sm:$0xff]
    %v384 = vld [vmem:[#allocation10 + $0x78] sm:$0xff]
    %v385 = vld [vmem:[%s7] sm:$0x1]
    %v387 = vlaneseq
    %v388 = vshrl.u32 %v387, 7
    %v389 = vsub.s32 0, %v388
    %v390 = vrot.slane %v385, %v389
    %392 = vmatprep.subr.mxu0 0.0
    %393 = vmatpush1.msra.mxu0 %v369
    %394 = vmatprep.subr.mxu0 0.0
    %395 = vmatpush1.msra.mxu0 %v370
    %396 = vmatprep.subr.mxu0 0.0
    %397 = vmatpush1.msra.mxu0 %v371
    %398 = vmatprep.subr.mxu0 0.0
    %399 = vmatpush1.msra.mxu0 %v372
    %400 = vmatprep.subr.mxu0 0.0
    %401 = vmatpush1.msra.mxu0 %v373
    %402 = vmatprep.subr.mxu0 0.0
    %403 = vmatpush1.msra.mxu0 %v374
    %404 = vmatprep.subr.mxu0 0.0
    %405 = vmatpush1.msra.mxu0 %v375
    %406 = vmatprep.subr.mxu0 0.0
    %407 = vmatpush1.msra.mxu0 %v376
    %408 = vmatprep.subr.mxu0 0.0
    %409 = vmatpush1.msra.mxu0 %v377
    %410 = vmatprep.subr.mxu0 0.0
    %411 = vmatpush1.msra.mxu0 %v378
    %412 = vmatprep.subr.mxu0 0.0
    %413 = vmatpush1.msra.mxu0 %v379
    %414 = vmatprep.subr.mxu0 0.0
    %415 = vmatpush1.msra.mxu0 %v380
    %416 = vmatprep.subr.mxu0 0.0
    %417 = vmatpush1.msra.mxu0 %v381
    %418 = vmatprep.subr.mxu0 0.0
    %419 = vmatpush1.msra.mxu0 %v382
    %420 = vmatprep.subr.mxu0 0.0
    %421 = vmatpush1.msra.mxu0 %v383
    %422 = vmatprep.subr.mxu0 0.0
    %423 = vmatpush1.msra.mxu0 %v384
    %424 = vmatprep.subr.mxu0 0.0
    %425 = vmatpush1.msra.mxu0 0.0
    %426 = vmatprep.subr.mxu0 0.0
    %427 = vmatpush1.msra.mxu0 0.0
    %428 = vmatprep.subr.mxu0 0.0
    %429 = vmatpush1.msra.mxu0 0.0
    %430 = vmatprep.subr.mxu0 0.0
    %431 = vmatpush1.msra.mxu0 0.0
    %432 = vmatprep.subr.mxu0 0.0
    %433 = vmatpush1.msra.mxu0 0.0
    %434 = vmatprep.subr.mxu0 0.0
    %435 = vmatpush1.msra.mxu0 0.0
    %436 = vmatprep.subr.mxu0 0.0
    %437 = vmatpush1.msra.mxu0 0.0
    %438 = vmatprep.subr.mxu0 0.0
    %439 = vmatpush1.msra.mxu0 0.0
    %440 = vmatprep.subr.mxu0 0.0
    %441 = vmatpush1.msra.mxu0 0.0
    %442 = vmatprep.subr.mxu0 0.0
    %443 = vmatpush1.msra.mxu0 0.0
    %444 = vmatprep.subr.mxu0 0.0
    %445 = vmatpush1.msra.mxu0 0.0
    %446 = vmatprep.subr.mxu0 0.0
    %447 = vmatpush1.msra.mxu0 0.0
    %448 = vmatprep.subr.mxu0 0.0
    %449 = vmatpush1.msra.mxu0 0.0
    %450 = vmatprep.subr.mxu0 0.0
    %451 = vmatpush1.msra.mxu0 0.0
    %452 = vmatprep.subr.mxu0 0.0
    %453 = vmatpush1.msra.mxu0 0.0
    %454 = vmatprep.subr.mxu0 0.0
    %455 = vmatpush1.msra.mxu0 0.0
    %456 = vmatprep.mubr.f32.mxu0 0.0
    %457 = vmatmul.mubr.f32.gmra.mrb[0].mxu0 %v100
    %v458 = vpop.f32.mrb[0].mxu0
    %v459 = vadd.f32 %v390, %v458
    %v460 = vpop.f32.mrb[0].mxu0
    %461 = vmatprep.mubr.f32.mxu0 0.0
    %462 = vmatmul.mubr.f32.gmra.mrb[0].mxu0 %v101
    %v463 = vpop.f32.mrb[0].mxu0
    %v464 = vadd.f32 %v390, %v463
    %v465 = vpop.f32.mrb[0].mxu0
    %466 = vdwg.mxu0
    %v467 = vmul.f32 %v267, %v459
    %v468 = vmul.f32 %v269, %v464
    %v469 = vadd.f32 %v361, %v467
    %v470 = vadd.f32 %v366, %v468
    %v471 = vtanh.pop %v469
    %v472 = vtanh.pop %v470
    %v473 = vsub.f32 %v100, %v471
    %v474 = vsub.f32 %v101, %v472
    %v475 = vmul.f32 %v268, %v473
    %v476 = vmul.f32 %v270, %v474
    %v477 = vadd.f32 %v471, %v475
    %v478 = vadd.f32 %v472, %v476
    %479 = vst [vmem:[#allocation11] sm:$0xff] %v477
    %480 = vst [vmem:[#allocation11 + $0x8] sm:$0xff] %v478
    // Predicated region
    $region54: #{tpu_custom_call.1} parent=1 // pred_check
      _
    $region55: #{tpu_custom_call.1} parent=1 // pred_check_branch
      %482 = sbr.rel (0) target = $region57
    $region56: #{tpu_custom_call.1} parent=1 // pred_region
      %s484 = ssub.s32 256, 256
      %485 = vsyncadd [#allocation4], %s484
      %s486 = sshll.u32 [#allocation11], 4
      %s487 = int_to_ptr.vmem [resolvable:$true] %s486
      %492 = dma.vmem_to_hbm [thread:$0]  %s487, 256, %s8, [#allocation4], 128, 128, 8
    $region57: #{tpu_custom_call.1} parent=1 // pred_fallthru
      _
    // Predicated region
    $region58: #{tpu_custom_call.1} parent=1 // pred_check
      _
    $region59: #{tpu_custom_call.1} parent=1 // pred_check_branch
      %494 = sbr.rel (0) target = $region61
    $region60: #{tpu_custom_call.1} parent=1 // pred_region
      %495 = dma.done [#allocation4], 256
    $region61: #{tpu_custom_call.1} parent=1 // pred_fallthru
      _
    %496 = vsyncpa [#allocation3], 1
    %497 = vsyncpa [#allocation6], 1
    %498 = vsyncpa [#allocation9], 1
    %499 = vsyncpa [#allocation4], 1

// kernel: tpu_custom_call.1
$region0: #{tpu_custom_call.1}
  #allocation0 [shape = 'u32[]', space=smem, size = 0x4, offset = 0x4, fixed_abs, tag = 'smem constant byte address 0x4 - core index']
  #allocation1 [shape = 'u32[144,128]{1,0:T(1,128)}', space=vmem, size = 0x12000, scoped, tag = 'internal scratch']
  %s0 = inlined_call_operand.hbm [shape: f32[16,128], index: 0, kind: input, shape index: {}]
  %s1 = inlined_call_operand.hbm [shape: f32[16,128], index: 1, kind: input, shape index: {}]
  %s2 = inlined_call_operand.hbm [shape: f32[256,256], index: 2, kind: input, shape index: {}]
  %s3 = inlined_call_operand.hbm [shape: f32[128,128], index: 3, kind: input, shape index: {}]
  %s4 = inlined_call_operand.hbm [shape: f32[128,128], index: 4, kind: input, shape index: {}]
  %s5 = inlined_call_operand.vmem [shape: f32[1,256], index: 5, kind: input, shape index: {}]
  %s6 = inlined_call_operand.vmem [shape: f32[1,128], index: 6, kind: input, shape index: {}]
  %s7 = inlined_call_operand.vmem [shape: f32[1,128], index: 7, kind: input, shape index: {}]
  %s8 = inlined_call_operand.hbm [shape: f32[16,128], index: 8, kind: output, shape index: {}]
  %s9 = sld [smem:[#allocation0]]
  $region62: #{tpu_custom_call.1} parent=0
    _
  %s11 = ssub.s32 1, %s9
  %s12 = scalar_select 0, %s11, %s9
  $region1: #{tpu_custom_call.1} parent=0
    #allocation2 [shape = 'u8[8192]{0}', space=vmem, size = 0x2000, scoped, tag = 'input window, operand 0, single buffered']
    #allocation3 [shape = 's32[1]{0}', space=sflag, size = 0x4, scoped, tag = 'scoped memory for tpu_custom_call.1']
    #allocation4 [shape = 's32[1]{0}', space=sflag, size = 0x4, scoped, tag = 'scoped memory for tpu_custom_call.1']
    #allocation5 [shape = 'u8[8192]{0}', space=vmem, size = 0x2000, scoped, tag = 'input window, operand 1, single buffered']
    #allocation6 [shape = 's32[1]{0}', space=sflag, size = 0x4, scoped, tag = 'scoped memory for tpu_custom_call.1']
    #allocation7 [shape = 'u8[262144]{0}', space=vmem, size = 0x40000, scoped, tag = 'input window, operand 2, single buffered']
    #allocation8 [shape = 'u8[65536]{0}', space=vmem, size = 0x10000, scoped, tag = 'input window, operand 3, single buffered']
    #allocation9 [shape = 's32[1]{0}', space=sflag, size = 0x4, scoped, tag = 'scoped memory for tpu_custom_call.1']
    #allocation10 [shape = 'u8[65536]{0}', space=vmem, size = 0x10000, scoped, tag = 'input window, operand 4, single buffered']
    #allocation11 [shape = 'u8[8192]{0}', space=vmem, size = 0x2000, scoped, tag = 'output window, operand 0, single buffered']
    %13 = vsyncpa [#allocation3], 0
    %14 = vsyncpa [#allocation6], 0
    %15 = vsyncpa [#allocation9], 0
    %16 = vsyncpa [#allocation4], 0
    // Predicated region
    $region2: #{tpu_custom_call.1} parent=1 // pred_check
      _
    $region3: #{tpu_custom_call.1} parent=1 // pred_check_branch
      %18 = sbr.rel (0) target = $region5
    $region4: #{tpu_custom_call.1} parent=1 // pred_region
      %s20 = ssub.s32 256, 256
      %21 = vsyncadd [#allocation3], %s20
      %s22 = sshll.u32 [#allocation2], 4
      %s23 = int_to_ptr.vmem [resolvable:$true] %s22
      %28 = dma.hbm_to_vmem [thread:$0]  %s0, 256, %s23, [#allocation3], 128, 128, 8
    $region5: #{tpu_custom_call.1} parent=1 // pred_fallthru
      _
    // Predicated region
    $region6: #{tpu_custom_call.1} parent=1 // pred_check
      _
    $region7: #{tpu_custom_call.1} parent=1 // pred_check_branch
      %30 = sbr.rel (0) target = $region9
    $region8: #{tpu_custom_call.1} parent=1 // pred_region
      %s32 = ssub.s32 256, 256
      %33 = vsyncadd [#allocation6], %s32
      %s34 = sshll.u32 [#allocation5], 4
      %s35 = int_to_ptr.vmem [resolvable:$true] %s34
      %40 = dma.hbm_to_vmem [thread:$0]  %s1, 256, %s35, [#allocation6], 128, 128, 8
    $region9: #{tpu_custom_call.1} parent=1 // pred_fallthru
      _
    // Predicated region
    $region10: #{tpu_custom_call.1} parent=1 // pred_check
      _
    $region11: #{tpu_custom_call.1} parent=1 // pred_check_branch
      %42 = sbr.rel (0) target = $region13
    $region12: #{tpu_custom_call.1} parent=1 // pred_region
      %s44 = ssub.s32 8192, 8192
      %45 = vsyncadd [#allocation6], %s44
      %s46 = sshll.u32 [#allocation7], 4
      %s47 = int_to_ptr.vmem [resolvable:$true] %s46
      %52 = dma.hbm_to_vmem [thread:$0]  %s2, 8192, %s47, [#allocation6], 256, 256, 16
    $region13: #{tpu_custom_call.1} parent=1 // pred_fallthru
      _
    // Predicated region
    $region14: #{tpu_custom_call.1} parent=1 // pred_check
      _
    $region15: #{tpu_custom_call.1} parent=1 // pred_check_branch
      %54 = sbr.rel (0) target = $region17
    $region16: #{tpu_custom_call.1} parent=1 // pred_region
      %s56 = ssub.s32 2048, 2048
      %57 = vsyncadd [#allocation9], %s56
      %s58 = sshll.u32 [#allocation8], 4
      %s59 = int_to_ptr.vmem [resolvable:$true] %s58
      %64 = dma.hbm_to_vmem [thread:$0]  %s3, 2048, %s59, [#allocation9], 128, 128, 8
    $region17: #{tpu_custom_call.1} parent=1 // pred_fallthru
      _
    // Predicated region
    $region18: #{tpu_custom_call.1} parent=1 // pred_check
      _
    $region19: #{tpu_custom_call.1} parent=1 // pred_check_branch
      %66 = sbr.rel (0) target = $region21
    $region20: #{tpu_custom_call.1} parent=1 // pred_region
      %s68 = ssub.s32 2048, 2048
      %69 = vsyncadd [#allocation9], %s68
      %s70 = sshll.u32 [#allocation10], 4
      %s71 = int_to_ptr.vmem [resolvable:$true] %s70
      %76 = dma.hbm_to_vmem [thread:$0]  %s4, 2048, %s71, [#allocation9], 128, 128, 8
    $region21: #{tpu_custom_call.1} parent=1 // pred_fallthru
      _
    // Predicated region
    $region22: #{tpu_custom_call.1} parent=1 // pred_check
      _
    $region23: #{tpu_custom_call.1} parent=1 // pred_check_branch
      %78 = sbr.rel (0) target = $region25
    $region24: #{tpu_custom_call.1} parent=1 // pred_region
      _
    $region25: #{tpu_custom_call.1} parent=1 // pred_fallthru
      _
    // Predicated region
    $region26: #{tpu_custom_call.1} parent=1 // pred_check
      _
    $region27: #{tpu_custom_call.1} parent=1 // pred_check_branch
      %80 = sbr.rel (0) target = $region29
    $region28: #{tpu_custom_call.1} parent=1 // pred_region
      _
    $region29: #{tpu_custom_call.1} parent=1 // pred_fallthru
      _
    // Predicated region
    $region30: #{tpu_custom_call.1} parent=1 // pred_check
      _
    $region31: #{tpu_custom_call.1} parent=1 // pred_check_branch
      %82 = sbr.rel (0) target = $region33
    $region32: #{tpu_custom_call.1} parent=1 // pred_region
      _
    $region33: #{tpu_custom_call.1} parent=1 // pred_fallthru
      _
    // Predicated region
    $region34: #{tpu_custom_call.1} parent=1 // pred_check
      _
    $region35: #{tpu_custom_call.1} parent=1 // pred_check_branch
      %84 = sbr.rel (0) target = $region37
    $region36: #{tpu_custom_call.1} parent=1 // pred_region
      %85 = dma.done [#allocation3], 256
    $region37: #{tpu_custom_call.1} parent=1 // pred_fallthru
      _
    // Predicated region
    $region38: #{tpu_custom_call.1} parent=1 // pred_check
      _
    $region39: #{tpu_custom_call.1} parent=1 // pred_check_branch
      %87 = sbr.rel (0) target = $region41
    $region40: #{tpu_custom_call.1} parent=1 // pred_region
      %88 = dma.done [#allocation6], 256
    $region41: #{tpu_custom_call.1} parent=1 // pred_fallthru
      _
    // Predicated region
    $region42: #{tpu_custom_call.1} parent=1 // pred_check
      _
    $region43: #{tpu_custom_call.1} parent=1 // pred_check_branch
      %90 = sbr.rel (0) target = $region45
    $region44: #{tpu_custom_call.1} parent=1 // pred_region
      %91 = dma.done [#allocation6], 8192
    $region45: #{tpu_custom_call.1} parent=1 // pred_fallthru
      _
    // Predicated region
    $region46: #{tpu_custom_call.1} parent=1 // pred_check
      _
    $region47: #{tpu_custom_call.1} parent=1 // pred_check_branch
      %93 = sbr.rel (0) target = $region49
    $region48: #{tpu_custom_call.1} parent=1 // pred_region
      %94 = dma.done [#allocation9], 2048
    $region49: #{tpu_custom_call.1} parent=1 // pred_fallthru
      _
    // Predicated region
    $region50: #{tpu_custom_call.1} parent=1 // pred_check
      _
    $region51: #{tpu_custom_call.1} parent=1 // pred_check_branch
      %96 = sbr.rel (0) target = $region53
    $region52: #{tpu_custom_call.1} parent=1 // pred_region
      %97 = dma.done [#allocation9], 2048
    $region53: #{tpu_custom_call.1} parent=1 // pred_fallthru
      _
    %v98 = vld [vmem:[#allocation2] sm:$0xff]
    %v99 = vld [vmem:[#allocation2 + $0x8] sm:$0xff]
    %v100 = vld [vmem:[#allocation5] sm:$0xff]
    %v101 = vld [vmem:[#allocation5 + $0x8] sm:$0xff]
    %v102 = vld [vmem:[#allocation7] sm:$0xff]
    %v103 = vld [vmem:[#allocation7 + $0x8] sm:$0xff]
    %v104 = vld [vmem:[#allocation7 + $0x10] sm:$0xff]
    %v105 = vld [vmem:[#allocation7 + $0x18] sm:$0xff]
    %v106 = vld [vmem:[#allocation7 + $0x20] sm:$0xff]
    %v107 = vld [vmem:[#allocation7 + $0x28] sm:$0xff]
    %v108 = vld [vmem:[#allocation7 + $0x30] sm:$0xff]
    %v109 = vld [vmem:[#allocation7 + $0x38] sm:$0xff]
    %v110 = vld [vmem:[#allocation7 + $0x40] sm:$0xff]
    %v111 = vld [vmem:[#allocation7 + $0x48] sm:$0xff]
    %v112 = vld [vmem:[#allocation7 + $0x50] sm:$0xff]
    %v113 = vld [vmem:[#allocation7 + $0x58] sm:$0xff]
    %v114 = vld [vmem:[#allocation7 + $0x60] sm:$0xff]
    %v115 = vld [vmem:[#allocation7 + $0x68] sm:$0xff]
    %v116 = vld [vmem:[#allocation7 + $0x70] sm:$0xff]
    %v117 = vld [vmem:[#allocation7 + $0x78] sm:$0xff]
    %v118 = vld [vmem:[#allocation7 + $0x80] sm:$0xff]
    %v119 = vld [vmem:[#allocation7 + $0x88] sm:$0xff]
    %v120 = vld [vmem:[#allocation7 + $0x90] sm:$0xff]
    %v121 = vld [vmem:[#allocation7 + $0x98] sm:$0xff]
    %v122 = vld [vmem:[#allocation7 + $0xa0] sm:$0xff]
    %v123 = vld [vmem:[#allocation7 + $0xa8] sm:$0xff]
    %v124 = vld [vmem:[#allocation7 + $0xb0] sm:$0xff]
    %v125 = vld [vmem:[#allocation7 + $0xb8] sm:$0xff]
    %v126 = vld [vmem:[#allocation7 + $0xc0] sm:$0xff]
    %v127 = vld [vmem:[#allocation7 + $0xc8] sm:$0xff]
    %v128 = vld [vmem:[#allocation7 + $0xd0] sm:$0xff]
    %v129 = vld [vmem:[#allocation7 + $0xd8] sm:$0xff]
    %v130 = vld [vmem:[#allocation7 + $0xe0] sm:$0xff]
    %v131 = vld [vmem:[#allocation7 + $0xe8] sm:$0xff]
    %v132 = vld [vmem:[#allocation7 + $0xf0] sm:$0xff]
    %v133 = vld [vmem:[#allocation7 + $0xf8] sm:$0xff]
    %v134 = vld [vmem:[#allocation7 + $0x100] sm:$0xff]
    %v135 = vld [vmem:[#allocation7 + $0x108] sm:$0xff]
    %v136 = vld [vmem:[#allocation7 + $0x110] sm:$0xff]
    %v137 = vld [vmem:[#allocation7 + $0x118] sm:$0xff]
    %v138 = vld [vmem:[#allocation7 + $0x120] sm:$0xff]
    %v139 = vld [vmem:[#allocation7 + $0x128] sm:$0xff]
    %v140 = vld [vmem:[#allocation7 + $0x130] sm:$0xff]
    %v141 = vld [vmem:[#allocation7 + $0x138] sm:$0xff]
    %v142 = vld [vmem:[#allocation7 + $0x140] sm:$0xff]
    %v143 = vld [vmem:[#allocation7 + $0x148] sm:$0xff]
    %v144 = vld [vmem:[#allocation7 + $0x150] sm:$0xff]
    %v145 = vld [vmem:[#allocation7 + $0x158] sm:$0xff]
    %v146 = vld [vmem:[#allocation7 + $0x160] sm:$0xff]
    %v147 = vld [vmem:[#allocation7 + $0x168] sm:$0xff]
    %v148 = vld [vmem:[#allocation7 + $0x170] sm:$0xff]
    %v149 = vld [vmem:[#allocation7 + $0x178] sm:$0xff]
    %v150 = vld [vmem:[#allocation7 + $0x180] sm:$0xff]
    %v151 = vld [vmem:[#allocation7 + $0x188] sm:$0xff]
    %v152 = vld [vmem:[#allocation7 + $0x190] sm:$0xff]
    %v153 = vld [vmem:[#allocation7 + $0x198] sm:$0xff]
    %v154 = vld [vmem:[#allocation7 + $0x1a0] sm:$0xff]
    %v155 = vld [vmem:[#allocation7 + $0x1a8] sm:$0xff]
    %v156 = vld [vmem:[#allocation7 + $0x1b0] sm:$0xff]
    %v157 = vld [vmem:[#allocation7 + $0x1b8] sm:$0xff]
    %v158 = vld [vmem:[#allocation7 + $0x1c0] sm:$0xff]
    %v159 = vld [vmem:[#allocation7 + $0x1c8] sm:$0xff]
    %v160 = vld [vmem:[#allocation7 + $0x1d0] sm:$0xff]
    %v161 = vld [vmem:[#allocation7 + $0x1d8] sm:$0xff]
    %v162 = vld [vmem:[#allocation7 + $0x1e0] sm:$0xff]
    %v163 = vld [vmem:[#allocation7 + $0x1e8] sm:$0xff]
    %v164 = vld [vmem:[#allocation7 + $0x1f0] sm:$0xff]
    %v165 = vld [vmem:[#allocation7 + $0x1f8] sm:$0xff]
    %v166 = vld [vmem:[%s5] sm:$0x3]
    %v168 = vlaneseq
    %v169 = vshrl.u32 %v168, 7
    %v170 = vsub.s32 0, %v169
    %v171 = vrot.slane %v166, %v170
    %v172 = vlaneseq
    %v173 = vshrl.u32 %v172, 7
    %v174 = vsub.s32 1, %v173
    %v175 = vrot.slane %v166, %v174
    %178 = vmatprep.subr.mxu0 %v103
    %179 = vmatpush1.msra.mxu0 %v102
    %180 = vmatprep.subr.mxu0 %v105
    %181 = vmatpush1.msra.mxu0 %v104
    %182 = vmatprep.subr.mxu0 %v107
    %183 = vmatpush1.msra.mxu0 %v106
    %184 = vmatprep.subr.mxu0 %v109
    %185 = vmatpush1.msra.mxu0 %v108
    %186 = vmatprep.subr.mxu0 %v111
    %187 = vmatpush1.msra.mxu0 %v110
    %188 = vmatprep.subr.mxu0 %v113
    %189 = vmatpush1.msra.mxu0 %v112
    %190 = vmatprep.subr.mxu0 %v115
    %191 = vmatpush1.msra.mxu0 %v114
    %192 = vmatprep.subr.mxu0 %v117
    %193 = vmatpush1.msra.mxu0 %v116
    %194 = vmatprep.subr.mxu0 %v119
    %195 = vmatpush1.msra.mxu0 %v118
    %196 = vmatprep.subr.mxu0 %v121
    %197 = vmatpush1.msra.mxu0 %v120
    %198 = vmatprep.subr.mxu0 %v123
    %199 = vmatpush1.msra.mxu0 %v122
    %200 = vmatprep.subr.mxu0 %v125
    %201 = vmatpush1.msra.mxu0 %v124
    %202 = vmatprep.subr.mxu0 %v127
    %203 = vmatpush1.msra.mxu0 %v126
    %204 = vmatprep.subr.mxu0 %v129
    %205 = vmatpush1.msra.mxu0 %v128
    %206 = vmatprep.subr.mxu0 %v131
    %207 = vmatpush1.msra.mxu0 %v130
    %208 = vmatprep.subr.mxu0 %v133
    %209 = vmatpush1.msra.mxu0 %v132
    %210 = vmatprep.subr.mxu0 %v135
    %211 = vmatpush1.msra.mxu0 %v134
    %212 = vmatprep.subr.mxu0 %v137
    %213 = vmatpush1.msra.mxu0 %v136
    %214 = vmatprep.subr.mxu0 %v139
    %215 = vmatpush1.msra.mxu0 %v138
    %216 = vmatprep.subr.mxu0 %v141
    %217 = vmatpush1.msra.mxu0 %v140
    %218 = vmatprep.subr.mxu0 %v143
    %219 = vmatpush1.msra.mxu0 %v142
    %220 = vmatprep.subr.mxu0 %v145
    %221 = vmatpush1.msra.mxu0 %v144
    %222 = vmatprep.subr.mxu0 %v147
    %223 = vmatpush1.msra.mxu0 %v146
    %224 = vmatprep.subr.mxu0 %v149
    %225 = vmatpush1.msra.mxu0 %v148
    %226 = vmatprep.subr.mxu0 %v151
    %227 = vmatpush1.msra.mxu0 %v150
    %228 = vmatprep.subr.mxu0 %v153
    %229 = vmatpush1.msra.mxu0 %v152
    %230 = vmatprep.subr.mxu0 %v155
    %231 = vmatpush1.msra.mxu0 %v154
    %232 = vmatprep.subr.mxu0 %v157
    %233 = vmatpush1.msra.mxu0 %v156
    %234 = vmatprep.subr.mxu0 %v159
    %235 = vmatpush1.msra.mxu0 %v158
    %236 = vmatprep.subr.mxu0 %v161
    %237 = vmatpush1.msra.mxu0 %v160
    %238 = vmatprep.subr.mxu0 %v163
    %239 = vmatpush1.msra.mxu0 %v162
    %240 = vmatprep.subr.mxu0 %v165
    %241 = vmatpush1.msra.mxu0 %v164
    %242 = vmatprep.mubr.f32.mxu0 %v100
    %243 = vmatmul.mubr.f32.gmra.mrb[0].mxu0 %v98
    %v244 = vpop.f32.mrb[0].mxu0
    %v245 = vadd.f32 %v171, %v244
    %v246 = vpop.f32.mrb[0].mxu0
    %v247 = vadd.f32 %v175, %v246
    %248 = vmatprep.mubr.f32.mxu0 %v101
    %249 = vmatmul.mubr.f32.gmra.mrb[0].mxu0 %v99
    %v250 = vpop.f32.mrb[0].mxu0
    %v251 = vadd.f32 %v171, %v250
    %v252 = vpop.f32.mrb[0].mxu0
    %v253 = vadd.f32 %v175, %v252
    %254 = vdwg.mxu0
    %v255 = vmul.f32 %v245, 0.5
    %v256 = vmul.f32 %v247, 0.5
    %v257 = vmul.f32 %v251, 0.5
    %v258 = vmul.f32 %v253, 0.5
    %v259 = vtanh.pop %v255
    %v260 = vtanh.pop %v256
    %v261 = vtanh.pop %v257
    %v262 = vtanh.pop %v258
    %v263 = vadd.f32 %v259, 1.0
    %v264 = vadd.f32 %v260, 1.0
    %v265 = vadd.f32 %v261, 1.0
    %v266 = vadd.f32 %v262, 1.0
    %v267 = vmul.f32 %v263, 0.5
    %v268 = vmul.f32 %v264, 0.5
    %v269 = vmul.f32 %v265, 0.5
    %v270 = vmul.f32 %v266, 0.5
    %v271 = vld [vmem:[#allocation8] sm:$0xff]
    %v272 = vld [vmem:[#allocation8 + $0x8] sm:$0xff]
    %v273 = vld [vmem:[#allocation8 + $0x10] sm:$0xff]
    %v274 = vld [vmem:[#allocation8 + $0x18] sm:$0xff]
    %v275 = vld [vmem:[#allocation8 + $0x20] sm:$0xff]
    %v276 = vld [vmem:[#allocation8 + $0x28] sm:$0xff]
    %v277 = vld [vmem:[#allocation8 + $0x30] sm:$0xff]
    %v278 = vld [vmem:[#allocation8 + $0x38] sm:$0xff]
    %v279 = vld [vmem:[#allocation8 + $0x40] sm:$0xff]
    %v280 = vld [vmem:[#allocation8 + $0x48] sm:$0xff]
    %v281 = vld [vmem:[#allocation8 + $0x50] sm:$0xff]
    %v282 = vld [vmem:[#allocation8 + $0x58] sm:$0xff]
    %v283 = vld [vmem:[#allocation8 + $0x60] sm:$0xff]
    %v284 = vld [vmem:[#allocation8 + $0x68] sm:$0xff]
    %v285 = vld [vmem:[#allocation8 + $0x70] sm:$0xff]
    %v286 = vld [vmem:[#allocation8 + $0x78] sm:$0xff]
    %v287 = vld [vmem:[%s6] sm:$0x1]
    %v289 = vlaneseq
    %v290 = vshrl.u32 %v289, 7
    %v291 = vsub.s32 0, %v290
    %v292 = vrot.slane %v287, %v291
    %294 = vmatprep.subr.mxu0 0.0
    %295 = vmatpush1.msra.mxu0 %v271
    %296 = vmatprep.subr.mxu0 0.0
    %297 = vmatpush1.msra.mxu0 %v272
    %298 = vmatprep.subr.mxu0 0.0
    %299 = vmatpush1.msra.mxu0 %v273
    %300 = vmatprep.subr.mxu0 0.0
    %301 = vmatpush1.msra.mxu0 %v274
    %302 = vmatprep.subr.mxu0 0.0
    %303 = vmatpush1.msra.mxu0 %v275
    %304 = vmatprep.subr.mxu0 0.0
    %305 = vmatpush1.msra.mxu0 %v276
    %306 = vmatprep.subr.mxu0 0.0
    %307 = vmatpush1.msra.mxu0 %v277
    %308 = vmatprep.subr.mxu0 0.0
    %309 = vmatpush1.msra.mxu0 %v278
    %310 = vmatprep.subr.mxu0 0.0
    %311 = vmatpush1.msra.mxu0 %v279
    %312 = vmatprep.subr.mxu0 0.0
    %313 = vmatpush1.msra.mxu0 %v280
    %314 = vmatprep.subr.mxu0 0.0
    %315 = vmatpush1.msra.mxu0 %v281
    %316 = vmatprep.subr.mxu0 0.0
    %317 = vmatpush1.msra.mxu0 %v282
    %318 = vmatprep.subr.mxu0 0.0
    %319 = vmatpush1.msra.mxu0 %v283
    %320 = vmatprep.subr.mxu0 0.0
    %321 = vmatpush1.msra.mxu0 %v284
    %322 = vmatprep.subr.mxu0 0.0
    %323 = vmatpush1.msra.mxu0 %v285
    %324 = vmatprep.subr.mxu0 0.0
    %325 = vmatpush1.msra.mxu0 %v286
    %326 = vmatprep.subr.mxu0 0.0
    %327 = vmatpush1.msra.mxu0 0.0
    %328 = vmatprep.subr.mxu0 0.0
    %329 = vmatpush1.msra.mxu0 0.0
    %330 = vmatprep.subr.mxu0 0.0
    %331 = vmatpush1.msra.mxu0 0.0
    %332 = vmatprep.subr.mxu0 0.0
    %333 = vmatpush1.msra.mxu0 0.0
    %334 = vmatprep.subr.mxu0 0.0
    %335 = vmatpush1.msra.mxu0 0.0
    %336 = vmatprep.subr.mxu0 0.0
    %337 = vmatpush1.msra.mxu0 0.0
    %338 = vmatprep.subr.mxu0 0.0
    %339 = vmatpush1.msra.mxu0 0.0
    %340 = vmatprep.subr.mxu0 0.0
    %341 = vmatpush1.msra.mxu0 0.0
    %342 = vmatprep.subr.mxu0 0.0
    %343 = vmatpush1.msra.mxu0 0.0
    %344 = vmatprep.subr.mxu0 0.0
    %345 = vmatpush1.msra.mxu0 0.0
    %346 = vmatprep.subr.mxu0 0.0
    %347 = vmatpush1.msra.mxu0 0.0
    %348 = vmatprep.subr.mxu0 0.0
    %349 = vmatpush1.msra.mxu0 0.0
    %350 = vmatprep.subr.mxu0 0.0
    %351 = vmatpush1.msra.mxu0 0.0
    %352 = vmatprep.subr.mxu0 0.0
    %353 = vmatpush1.msra.mxu0 0.0
    %354 = vmatprep.subr.mxu0 0.0
    %355 = vmatpush1.msra.mxu0 0.0
    %356 = vmatprep.subr.mxu0 0.0
    %357 = vmatpush1.msra.mxu0 0.0
    %358 = vmatprep.mubr.f32.mxu0 0.0
    %359 = vmatmul.mubr.f32.gmra.mrb[0].mxu0 %v98
    %v360 = vpop.f32.mrb[0].mxu0
    %v361 = vadd.f32 %v292, %v360
    %v362 = vpop.f32.mrb[0].mxu0
    %363 = vmatprep.mubr.f32.mxu0 0.0
    %364 = vmatmul.mubr.f32.gmra.mrb[0].mxu0 %v99
    %v365 = vpop.f32.mrb[0].mxu0
    %v366 = vadd.f32 %v292, %v365
    %v367 = vpop.f32.mrb[0].mxu0
    %368 = vdwg.mxu0
    %v369 = vld [vmem:[#allocation10] sm:$0xff]
    %v370 = vld [vmem:[#allocation10 + $0x8] sm:$0xff]
    %v371 = vld [vmem:[#allocation10 + $0x10] sm:$0xff]
    %v372 = vld [vmem:[#allocation10 + $0x18] sm:$0xff]
    %v373 = vld [vmem:[#allocation10 + $0x20] sm:$0xff]
    %v374 = vld [vmem:[#allocation10 + $0x28] sm:$0xff]
    %v375 = vld [vmem:[#allocation10 + $0x30] sm:$0xff]
    %v376 = vld [vmem:[#allocation10 + $0x38] sm:$0xff]
    %v377 = vld [vmem:[#allocation10 + $0x40] sm:$0xff]
    %v378 = vld [vmem:[#allocation10 + $0x48] sm:$0xff]
    %v379 = vld [vmem:[#allocation10 + $0x50] sm:$0xff]
    %v380 = vld [vmem:[#allocation10 + $0x58] sm:$0xff]
    %v381 = vld [vmem:[#allocation10 + $0x60] sm:$0xff]
    %v382 = vld [vmem:[#allocation10 + $0x68] sm:$0xff]
    %v383 = vld [vmem:[#allocation10 + $0x70] sm:$0xff]
    %v384 = vld [vmem:[#allocation10 + $0x78] sm:$0xff]
    %v385 = vld [vmem:[%s7] sm:$0x1]
    %v387 = vlaneseq
    %v388 = vshrl.u32 %v387, 7
    %v389 = vsub.s32 0, %v388
    %v390 = vrot.slane %v385, %v389
    %392 = vmatprep.subr.mxu0 0.0
    %393 = vmatpush1.msra.mxu0 %v369
    %394 = vmatprep.subr.mxu0 0.0
    %395 = vmatpush1.msra.mxu0 %v370
    %396 = vmatprep.subr.mxu0 0.0
    %397 = vmatpush1.msra.mxu0 %v371
    %398 = vmatprep.subr.mxu0 0.0
    %399 = vmatpush1.msra.mxu0 %v372
    %400 = vmatprep.subr.mxu0 0.0
    %401 = vmatpush1.msra.mxu0 %v373
    %402 = vmatprep.subr.mxu0 0.0
    %403 = vmatpush1.msra.mxu0 %v374
    %404 = vmatprep.subr.mxu0 0.0
    %405 = vmatpush1.msra.mxu0 %v375
    %406 = vmatprep.subr.mxu0 0.0
    %407 = vmatpush1.msra.mxu0 %v376
    %408 = vmatprep.subr.mxu0 0.0
    %409 = vmatpush1.msra.mxu0 %v377
    %410 = vmatprep.subr.mxu0 0.0
    %411 = vmatpush1.msra.mxu0 %v378
    %412 = vmatprep.subr.mxu0 0.0
    %413 = vmatpush1.msra.mxu0 %v379
    %414 = vmatprep.subr.mxu0 0.0
    %415 = vmatpush1.msra.mxu0 %v380
    %416 = vmatprep.subr.mxu0 0.0
    %417 = vmatpush1.msra.mxu0 %v381
    %418 = vmatprep.subr.mxu0 0.0
    %419 = vmatpush1.msra.mxu0 %v382
    %420 = vmatprep.subr.mxu0 0.0
    %421 = vmatpush1.msra.mxu0 %v383
    %422 = vmatprep.subr.mxu0 0.0
    %423 = vmatpush1.msra.mxu0 %v384
    %424 = vmatprep.subr.mxu0 0.0
    %425 = vmatpush1.msra.mxu0 0.0
    %426 = vmatprep.subr.mxu0 0.0
    %427 = vmatpush1.msra.mxu0 0.0
    %428 = vmatprep.subr.mxu0 0.0
    %429 = vmatpush1.msra.mxu0 0.0
    %430 = vmatprep.subr.mxu0 0.0
    %431 = vmatpush1.msra.mxu0 0.0
    %432 = vmatprep.subr.mxu0 0.0
    %433 = vmatpush1.msra.mxu0 0.0
    %434 = vmatprep.subr.mxu0 0.0
    %435 = vmatpush1.msra.mxu0 0.0
    %436 = vmatprep.subr.mxu0 0.0
    %437 = vmatpush1.msra.mxu0 0.0
    %438 = vmatprep.subr.mxu0 0.0
    %439 = vmatpush1.msra.mxu0 0.0
    %440 = vmatprep.subr.mxu0 0.0
    %441 = vmatpush1.msra.mxu0 0.0
    %442 = vmatprep.subr.mxu0 0.0
    %443 = vmatpush1.msra.mxu0 0.0
    %444 = vmatprep.subr.mxu0 0.0
    %445 = vmatpush1.msra.mxu0 0.0
    %446 = vmatprep.subr.mxu0 0.0
    %447 = vmatpush1.msra.mxu0 0.0
    %448 = vmatprep.subr.mxu0 0.0
    %449 = vmatpush1.msra.mxu0 0.0
    %450 = vmatprep.subr.mxu0 0.0
    %451 = vmatpush1.msra.mxu0 0.0
    %452 = vmatprep.subr.mxu0 0.0
    %453 = vmatpush1.msra.mxu0 0.0
    %454 = vmatprep.subr.mxu0 0.0
    %455 = vmatpush1.msra.mxu0 0.0
    %456 = vmatprep.mubr.f32.mxu0 0.0
    %457 = vmatmul.mubr.f32.gmra.mrb[0].mxu0 %v100
    %v458 = vpop.f32.mrb[0].mxu0
    %v459 = vadd.f32 %v390, %v458
    %v460 = vpop.f32.mrb[0].mxu0
    %461 = vmatprep.mubr.f32.mxu0 0.0
    %462 = vmatmul.mubr.f32.gmra.mrb[0].mxu0 %v101
    %v463 = vpop.f32.mrb[0].mxu0
    %v464 = vadd.f32 %v390, %v463
    %v465 = vpop.f32.mrb[0].mxu0
    %466 = vdwg.mxu0
    %v467 = vmul.f32 %v267, %v459
    %v468 = vmul.f32 %v269, %v464
    %v469 = vadd.f32 %v361, %v467
    %v470 = vadd.f32 %v366, %v468
    %v471 = vtanh.pop %v469
    %v472 = vtanh.pop %v470
    %v473 = vsub.f32 %v100, %v471
    %v474 = vsub.f32 %v101, %v472
    %v475 = vmul.f32 %v268, %v473
    %v476 = vmul.f32 %v270, %v474
    %v477 = vadd.f32 %v471, %v475
    %v478 = vadd.f32 %v472, %v476
    %479 = vst [vmem:[#allocation11] sm:$0xff] %v477
    %480 = vst [vmem:[#allocation11 + $0x8] sm:$0xff] %v478
    // Predicated region
    $region54: #{tpu_custom_call.1} parent=1 // pred_check
      _
    $region55: #{tpu_custom_call.1} parent=1 // pred_check_branch
      %482 = sbr.rel (0) target = $region57
    $region56: #{tpu_custom_call.1} parent=1 // pred_region
      %s484 = ssub.s32 256, 256
      %485 = vsyncadd [#allocation4], %s484
      %s486 = sshll.u32 [#allocation11], 4
      %s487 = int_to_ptr.vmem [resolvable:$true] %s486
      %492 = dma.vmem_to_hbm [thread:$0]  %s487, 256, %s8, [#allocation4], 128, 128, 8
    $region57: #{tpu_custom_call.1} parent=1 // pred_fallthru
      _
    // Predicated region
    $region58: #{tpu_custom_call.1} parent=1 // pred_check
      _
    $region59: #{tpu_custom_call.1} parent=1 // pred_check_branch
      %494 = sbr.rel (0) target = $region61
    $region60: #{tpu_custom_call.1} parent=1 // pred_region
      %495 = dma.done [#allocation4], 256
    $region61: #{tpu_custom_call.1} parent=1 // pred_fallthru
      _
    %496 = vsyncpa [#allocation3], 1
    %497 = vsyncpa [#allocation6], 1
    %498 = vsyncpa [#allocation9], 1
    %499 = vsyncpa [#allocation4], 1

</llo_original>
